<compile_context>
chip_gen: v7x
topology: tpu7x:2x2x1
jax: 0.10.0
libtpu: 0.0.40
codegen_flags: <defaults>
</compile_context>

<pallas_src>
import functools

import jax
import jax.numpy as jnp
from jax.experimental import pallas as pl
from jax.experimental.pallas import tpu as pltpu


# ---------------------------------------------------------------------------
# Fused kernel: per chunk -> gate prologue matmul, T recurrent steps,
# vocab projection epilogue matmul.
# ---------------------------------------------------------------------------
def _generator_fused_kernel(emb_ref, h0_ref, c0_ref, wih_ref, whh_ref,
                            bg_ref, wproj_ref, bproj_ref,
                            dec_ref, out_ref, cn_ref,
                            h_sc, c_sc, hs_sc, *, tsteps, batch, nhid):
    t = pl.program_id(0)

    @pl.when(t == 0)
    def _():
        h_sc[...] = h0_ref[...]
        c_sc[...] = c0_ref[...]

    B, H = batch, nhid

    # Prologue: x-contribution to all gates for the whole chunk (one MXU push).
    gx = (jnp.dot(emb_ref[...], wih_ref[...],
                  preferred_element_type=jnp.float32) + bg_ref[...])   # (T*B, 4H)

    whh = whh_ref[...]                        # (H, 4H), held in vregs all chunk
    h = h_sc[...]                             # (B, H)
    c = c_sc[...]                             # (B, H)

    # Fully unrolled chunk loop (static trip count).  Only the tiny recurrent
    # (B,H)@(H,4H) matmul remains on the sequential critical path.
    for s in range(tsteps):
        gates = gx[s * B:(s + 1) * B, :] + jnp.dot(
            h, whh, preferred_element_type=jnp.float32)                # (B, 4H)
        sig = jax.nn.sigmoid(gates)           # one EUP pass over all 4H lanes
        tnh = jnp.tanh(gates)                 # one EUP pass over all 4H lanes
        i_g = sig[:, 0 * H:1 * H]
        f_g = sig[:, 1 * H:2 * H]
        g_g = tnh[:, 2 * H:3 * H]
        o_g = sig[:, 3 * H:4 * H]
        c = f_g * c + i_g * g_g
        h = o_g * jnp.tanh(c)
        hs_sc[s * B:(s + 1) * B, :] = h       # VMEM buffer; HBM store once/chunk

    h_sc[...] = h
    c_sc[...] = c
    cn_ref[...] = c                           # constant block index -> last write wins

    hs = hs_sc[...]                           # (T*B, H)
    out_ref[...] = hs                         # single lane-packed store per chunk
    # Epilogue: vocab projection for the whole chunk (one MXU push, lane-dense).
    dec_ref[...] = (jnp.dot(hs, wproj_ref[...],
                            preferred_element_type=jnp.float32) + bproj_ref[...])


def _pick_chunk(S, B, cap=32):
    """Largest chunk length <= cap dividing S whose (chunk*B) sublane extent
    is 8-aligned; fall back to a single full-length chunk (always legal)."""
    cand = [t for t in range(1, min(S, cap) + 1)
            if S % t == 0 and (t * B) % 8 == 0]
    return max(cand) if cand else S


# ---------------------------------------------------------------------------
# Full Generator forward (teacher-forcing path).
# ---------------------------------------------------------------------------
def generator_forward(data, h0, c0, params):
    """data: (S, B) int32, h0/c0: (1, B, H) f32.

    Returns (decoded (S,B,V), outputs (S,B,H), (h_n, c_n))."""
    emb_w = params["emb_w"]            # (V, E)
    w_ih = params["w_ih"]              # (4H, E)
    w_hh = params["w_hh"]              # (4H, H)
    b_ih = params["b_ih"]              # (4H,)
    b_hh = params["b_hh"]              # (4H,)
    w_proj = params["w_proj"]          # (V, H)
    b_proj = params["b_proj"]          # (V,)

    S, B = data.shape
    V, E = emb_w.shape
    H = w_hh.shape[1]

    # Glue outside the kernel: embedding gather + parameter transposes.
    emb2d = jnp.take(emb_w, data.reshape(-1), axis=0)       # (S*B, E)
    wih_t = jnp.transpose(w_ih)                             # (E, 4H)
    whh_t = jnp.transpose(w_hh)                             # (H, 4H)
    bg = (b_ih + b_hh).reshape(1, 4 * H)                    # (1, 4H)

    # Pad vocab dim to a lane multiple: keeps the decoded store unmasked and
    # guards the output block size for non-128-multiple vocabularies.
    Vp = ((V + 127) // 128) * 128
    wproj_t = jnp.transpose(w_proj)                         # (H, V)
    if Vp != V:
        wproj_t = jnp.pad(wproj_t, ((0, 0), (0, Vp - V)))
        bproj = jnp.pad(b_proj, (0, Vp - V)).reshape(1, Vp)
    else:
        bproj = b_proj.reshape(1, Vp)

    tsteps = _pick_chunk(S, B, cap=32)
    n_chunks = S // tsteps
    TB = tsteps * B

    kernel = functools.partial(_generator_fused_kernel,
                               tsteps=tsteps, batch=B, nhid=H)

    grid_spec = pltpu.PrefetchScalarGridSpec(
        num_scalar_prefetch=0,
        grid=(n_chunks,),
        in_specs=[
            pl.BlockSpec((TB, E), lambda t: (t, 0)),          # emb chunk
            pl.BlockSpec((B, H), lambda t: (0, 0)),           # h0
            pl.BlockSpec((B, H), lambda t: (0, 0)),           # c0
            pl.BlockSpec((E, 4 * H), lambda t: (0, 0)),       # W_ih^T
            pl.BlockSpec((H, 4 * H), lambda t: (0, 0)),       # W_hh^T
            pl.BlockSpec((1, 4 * H), lambda t: (0, 0)),       # b_ih + b_hh
            pl.BlockSpec((H, Vp), lambda t: (0, 0)),          # W_proj^T (padded)
            pl.BlockSpec((1, Vp), lambda t: (0, 0)),          # b_proj (padded)
        ],
        out_specs=[
            pl.BlockSpec((TB, Vp), lambda t: (t, 0)),         # decoded chunk
            pl.BlockSpec((TB, H), lambda t: (t, 0)),          # outputs chunk
            pl.BlockSpec((B, H), lambda t: (0, 0)),           # c_n
        ],
        scratch_shapes=[
            pltpu.VMEM((B, H), jnp.float32),                  # h carry
            pltpu.VMEM((B, H), jnp.float32),                  # c carry
            pltpu.VMEM((TB, H), jnp.float32),                 # chunk hidden buffer
        ],
    )

    # Rough per-step working set (all blocks + scratch), x2 double buffering,
    # x2 headroom; floor 8 MiB (below v5e's 16 MiB scoped default), cap 64 MiB
    # (v7x physical VMEM).
    block_bytes = 4 * (TB * E + 3 * B * H + E * 4 * H + H * 4 * H + 4 * H
                       + H * Vp + Vp + TB * Vp + 2 * TB * H)
    vmem_limit = int(min(max(4 * block_bytes, 8 * 1024 * 1024),
                         64 * 1024 * 1024))

    dec2d, out2d, c_last = pl.pallas_call(
        kernel,
        grid_spec=grid_spec,
        out_shape=(
            jax.ShapeDtypeStruct((S * B, Vp), jnp.float32),
            jax.ShapeDtypeStruct((S * B, H), jnp.float32),
            jax.ShapeDtypeStruct((B, H), jnp.float32),
        ),
        compiler_params=pltpu.CompilerParams(
            # Sequential h/c carry + constant-index c_n: must stay "arbitrary".
            dimension_semantics=("arbitrary",),
            vmem_limit_bytes=vmem_limit),
    )(emb2d, h0[0], c0[0], wih_t, whh_t, bg, wproj_t, bproj)

    decoded = dec2d[:, :V].reshape(S, B, V)
    outputs = out2d.reshape(S, B, H)
    h_n = outputs[S - 1:S]                                    # (1, B, H)
    c_n = c_last[None]                                        # (1, B, H)
    return decoded, outputs, (h_n, c_n)


# ---------------------------------------------------------------------------
# Pure-JAX reference (PyTorch single-layer LSTM semantics) for validation.
# ---------------------------------------------------------------------------
def _reference_forward(data, h0, c0, params):
    emb_w = params["emb_w"]
    w_ih, w_hh = params["w_ih"], params["w_hh"]
    b_ih, b_hh = params["b_ih"], params["b_hh"]
    w_proj, b_proj = params["w_proj"], params["b_proj"]
    H = w_hh.shape[1]

    emb = jnp.take(emb_w, data, axis=0)            # (S, B, E)

    def step(carry, x_t):
        h, c = carry
        gates = x_t @ w_ih.T + h @ w_hh.T + b_ih + b_hh
        i = jax.nn.sigmoid(gates[:, 0 * H:1 * H])
        f = jax.nn.sigmoid(gates[:, 1 * H:2 * H])
        g = jnp.tanh(gates[:, 2 * H:3 * H])
        o = jax.nn.sigmoid(gates[:, 3 * H:4 * H])
        c_new = f * c + i * g
        h_new = o * jnp.tanh(c_new)
        return (h_new, c_new), h_new

    (h_n, c_n), outputs = jax.lax.scan(step, (h0[0], c0[0]), emb)
    decoded = outputs @ w_proj.T + b_proj
    return decoded, outputs, (h_n[None], c_n[None])


if __name__ == "__main__":
    # Small shapes consistent with the module's forward (teacher forcing).
    S, B = 16, 4           # (max_len, batch_size) == data.size()
    V, E, H = 128, 32, 32  # num_embeddings, embedding_dim, nhid
    eos_id = 1             # unused on the teacher-forcing path

    key = jax.random.PRNGKey(0)
    keys = jax.random.split(key, 10)

    params = {
        "emb_w":  0.1 * jax.random.normal(keys[0], (V, E), jnp.float32),
        "w_ih":   0.1 * jax.random.normal(keys[1], (4 * H, E), jnp.float32),
        "w_hh":   0.1 * jax.random.normal(keys[2], (4 * H, H), jnp.float32),
        "b_ih":   0.1 * jax.random.normal(keys[3], (4 * H,), jnp.float32),
        "b_hh":   0.1 * jax.random.normal(keys[4], (4 * H,), jnp.float32),
        "w_proj": 0.1 * jax.random.normal(keys[5], (V, H), jnp.float32),
        "b_proj": 0.1 * jax.random.normal(keys[6], (V,), jnp.float32),
    }

    data = jax.random.randint(keys[7], (S, B), 0, V, dtype=jnp.int32)
    h0 = 0.1 * jax.random.normal(keys[8], (1, B, H), jnp.float32)
    c0 = 0.1 * jax.random.normal(keys[9], (1, B, H), jnp.float32)

    decoded, outputs, (h_n, c_n) = generator_forward(data, h0, c0, params)
    jax.block_until_ready((decoded, outputs, h_n, c_n))

    # Validate against the pure-JAX reference.
    d_ref, o_ref, (hn_ref, cn_ref) = _reference_forward(data, h0, c0, params)
    assert jnp.allclose(decoded, d_ref, atol=1e-4, rtol=1e-4)
    assert jnp.allclose(outputs, o_ref, atol=1e-4, rtol=1e-4)
    assert jnp.allclose(h_n, hn_ref, atol=1e-4, rtol=1e-4)
    assert jnp.allclose(c_n, cn_ref, atol=1e-4, rtol=1e-4)

    print("KERNEL_OK")
</pallas_src>

<mosaic_0001>
module attributes {stable_mosaic.version = 11 : i64} {
  func.func @_generator_fused_kernel(%arg0: i32, %arg1: memref<64x32xf32, #tpu.memory_space<vmem>>, %arg2: memref<4x32xf32, #tpu.memory_space<vmem>>, %arg3: memref<4x32xf32, #tpu.memory_space<vmem>>, %arg4: memref<32x128xf32, #tpu.memory_space<vmem>>, %arg5: memref<32x128xf32, #tpu.memory_space<vmem>>, %arg6: memref<1x128xf32, #tpu.memory_space<vmem>>, %arg7: memref<32x128xf32, #tpu.memory_space<vmem>>, %arg8: memref<1x128xf32, #tpu.memory_space<vmem>>, %arg9: memref<64x128xf32, #tpu.memory_space<vmem>>, %arg10: memref<64x32xf32, #tpu.memory_space<vmem>>, %arg11: memref<4x32xf32, #tpu.memory_space<vmem>>, %arg12: memref<4x32xf32, #tpu.memory_space<vmem>>, %arg13: memref<4x32xf32, #tpu.memory_space<vmem>>, %arg14: memref<64x32xf32, #tpu.memory_space<vmem>>) attributes {dimension_semantics = [#tpu.dimension_semantics<arbitrary>], iteration_bounds = array<i64: 1>, scalar_prefetch = 0 : i64, scratch_operands = 3 : i64, tpu.core_type = #tpu.core_type<tc>, window_params = [{transform_indices = @transform_0, window_bounds = array<i64: 64, 32>}, {pipeline_mode = #tpu.pipeline_mode<synchronous>, transform_indices = @transform_1, window_bounds = array<i64: 4, 32>}, {pipeline_mode = #tpu.pipeline_mode<synchronous>, transform_indices = @transform_2, window_bounds = array<i64: 4, 32>}, {pipeline_mode = #tpu.pipeline_mode<synchronous>, transform_indices = @transform_3, window_bounds = array<i64: 32, 128>}, {pipeline_mode = #tpu.pipeline_mode<synchronous>, transform_indices = @transform_4, window_bounds = array<i64: 32, 128>}, {pipeline_mode = #tpu.pipeline_mode<synchronous>, transform_indices = @transform_5, window_bounds = array<i64: 1, 128>}, {pipeline_mode = #tpu.pipeline_mode<synchronous>, transform_indices = @transform_6, window_bounds = array<i64: 32, 128>}, {pipeline_mode = #tpu.pipeline_mode<synchronous>, transform_indices = @transform_7, window_bounds = array<i64: 1, 128>}, {transform_indices = @transform_8, window_bounds = array<i64: 64, 128>}, {transform_indices = @transform_9, window_bounds = array<i64: 64, 32>}, {pipeline_mode = #tpu.pipeline_mode<synchronous>, transform_indices = @transform_10, window_bounds = array<i64: 4, 32>}]} {
    %c0_i32 = arith.constant 0 : i32
    %0 = arith.cmpi eq, %arg0, %c0_i32 : i32
    %1 = arith.extui %0 : i1 to i32
    %c0_i32_0 = arith.constant 0 : i32
    %2 = arith.cmpi ne, %1, %c0_i32_0 : i32
    scf.if %2 {
      %c0_78 = arith.constant 0 : index
      %c0_79 = arith.constant 0 : index
      %327 = vector.load %arg2[%c0_78, %c0_79] : memref<4x32xf32, #tpu.memory_space<vmem>>, vector<4x32xf32>
      %c0_80 = arith.constant 0 : index
      %c0_81 = arith.constant 0 : index
      %328 = vector.load %arg12[%c0_80, %c0_81] : memref<4x32xf32, #tpu.memory_space<vmem>>, vector<4x32xf32>
      tpu.vector_store %arg12[%c0_80, %c0_81], %327 {strides = array<i32>} : memref<4x32xf32, #tpu.memory_space<vmem>>, vector<4x32xf32>,
      %c0_82 = arith.constant 0 : index
      %c0_83 = arith.constant 0 : index
      %329 = vector.load %arg3[%c0_82, %c0_83] : memref<4x32xf32, #tpu.memory_space<vmem>>, vector<4x32xf32>
      %c0_84 = arith.constant 0 : index
      %c0_85 = arith.constant 0 : index
      %330 = vector.load %arg13[%c0_84, %c0_85] : memref<4x32xf32, #tpu.memory_space<vmem>>, vector<4x32xf32>
      tpu.vector_store %arg13[%c0_84, %c0_85], %329 {strides = array<i32>} : memref<4x32xf32, #tpu.memory_space<vmem>>, vector<4x32xf32>,
    } else {
    }
    %c0 = arith.constant 0 : index
    %c0_1 = arith.constant 0 : index
    %3 = vector.load %arg1[%c0, %c0_1] : memref<64x32xf32, #tpu.memory_space<vmem>>, vector<64x32xf32>
    %c0_2 = arith.constant 0 : index
    %c0_3 = arith.constant 0 : index
    %4 = vector.load %arg4[%c0_2, %c0_3] : memref<32x128xf32, #tpu.memory_space<vmem>>, vector<32x128xf32>
    %cst = arith.constant dense<0.000000e+00> : vector<64x128xf32>
    %5 = tpu.matmul %3, %4, %cst {dimension_numbers = #tpu.dot_dimension_numbers<[1], [0], [0], [1], [0, 0, 1, 1], [], []>} : vector<64x32xf32>, vector<32x128xf32>, vector<64x128xf32> -> vector<64x128xf32>
    %c0_4 = arith.constant 0 : index
    %c0_5 = arith.constant 0 : index
    %6 = vector.load %arg6[%c0_4, %c0_5] : memref<1x128xf32, #tpu.memory_space<vmem>>, vector<1x128xf32>
    %7 = vector.broadcast %6 : vector<1x128xf32> to vector<64x128xf32>
    %8 = arith.addf %5, %7 : vector<64x128xf32>
    %c0_6 = arith.constant 0 : index
    %c0_7 = arith.constant 0 : index
    %9 = vector.load %arg5[%c0_6, %c0_7] : memref<32x128xf32, #tpu.memory_space<vmem>>, vector<32x128xf32>
    %c0_8 = arith.constant 0 : index
    %c0_9 = arith.constant 0 : index
    %10 = vector.load %arg12[%c0_8, %c0_9] : memref<4x32xf32, #tpu.memory_space<vmem>>, vector<4x32xf32>
    %c0_10 = arith.constant 0 : index
    %c0_11 = arith.constant 0 : index
    %11 = vector.load %arg13[%c0_10, %c0_11] : memref<4x32xf32, #tpu.memory_space<vmem>>, vector<4x32xf32>
    %12 = vector.extract_strided_slice %8 {offsets = [0, 0], sizes = [4, 128], strides = [1, 1]} : vector<64x128xf32> to vector<4x128xf32>
    %cst_12 = arith.constant dense<0.000000e+00> : vector<4x128xf32>
    %13 = tpu.matmul %10, %9, %cst_12 {dimension_numbers = #tpu.dot_dimension_numbers<[1], [0], [0], [1], [0, 0, 1, 1], [], []>} : vector<4x32xf32>, vector<32x128xf32>, vector<4x128xf32> -> vector<4x128xf32>
    %14 = arith.addf %12, %13 : vector<4x128xf32>
    %15 = arith.negf %14 : vector<4x128xf32>
    %16 = math.exp %15 : vector<4x128xf32>
    %cst_13 = arith.constant 1.000000e+00 : f32
    %17 = vector.broadcast %cst_13 : f32 to vector<4x128xf32>
    %18 = arith.addf %17, %16 : vector<4x128xf32>
    %19 = arith.divf %17, %18 : vector<4x128xf32>
    %20 = math.tanh %14 : vector<4x128xf32>
    %21 = vector.extract_strided_slice %19 {offsets = [0, 0], sizes = [4, 32], strides = [1, 1]} : vector<4x128xf32> to vector<4x32xf32>
    %22 = vector.extract_strided_slice %19 {offsets = [0, 32], sizes = [4, 32], strides = [1, 1]} : vector<4x128xf32> to vector<4x32xf32>
    %23 = vector.extract_strided_slice %20 {offsets = [0, 64], sizes = [4, 32], strides = [1, 1]} : vector<4x128xf32> to vector<4x32xf32>
    %24 = vector.extract_strided_slice %19 {offsets = [0, 96], sizes = [4, 32], strides = [1, 1]} : vector<4x128xf32> to vector<4x32xf32>
    %25 = arith.mulf %22, %11 : vector<4x32xf32>
    %26 = arith.mulf %21, %23 : vector<4x32xf32>
    %27 = arith.addf %25, %26 : vector<4x32xf32>
    %28 = math.tanh %27 : vector<4x32xf32>
    %29 = arith.mulf %24, %28 : vector<4x32xf32>
    %c0_14 = arith.constant 0 : index
    %c0_15 = arith.constant 0 : index
    %30 = vector.load %arg14[%c0_14, %c0_15] : memref<64x32xf32, #tpu.memory_space<vmem>>, vector<4x32xf32>
    tpu.vector_store %arg14[%c0_14, %c0_15], %29 {strides = array<i32>} : memref<64x32xf32, #tpu.memory_space<vmem>>, vector<4x32xf32>,
    %31 = vector.extract_strided_slice %8 {offsets = [4, 0], sizes = [4, 128], strides = [1, 1]} : vector<64x128xf32> to vector<4x128xf32>
    %cst_16 = arith.constant dense<0.000000e+00> : vector<4x128xf32>
    %32 = tpu.matmul %29, %9, %cst_16 {dimension_numbers = #tpu.dot_dimension_numbers<[1], [0], [0], [1], [0, 0, 1, 1], [], []>} : vector<4x32xf32>, vector<32x128xf32>, vector<4x128xf32> -> vector<4x128xf32>
    %33 = arith.addf %31, %32 : vector<4x128xf32>
    %34 = arith.negf %33 : vector<4x128xf32>
    %35 = math.exp %34 : vector<4x128xf32>
    %cst_17 = arith.constant 1.000000e+00 : f32
    %36 = vector.broadcast %cst_17 : f32 to vector<4x128xf32>
    %37 = arith.addf %36, %35 : vector<4x128xf32>
    %38 = arith.divf %36, %37 : vector<4x128xf32>
    %39 = math.tanh %33 : vector<4x128xf32>
    %40 = vector.extract_strided_slice %38 {offsets = [0, 0], sizes = [4, 32], strides = [1, 1]} : vector<4x128xf32> to vector<4x32xf32>
    %41 = vector.extract_strided_slice %38 {offsets = [0, 32], sizes = [4, 32], strides = [1, 1]} : vector<4x128xf32> to vector<4x32xf32>
    %42 = vector.extract_strided_slice %39 {offsets = [0, 64], sizes = [4, 32], strides = [1, 1]} : vector<4x128xf32> to vector<4x32xf32>
    %43 = vector.extract_strided_slice %38 {offsets = [0, 96], sizes = [4, 32], strides = [1, 1]} : vector<4x128xf32> to vector<4x32xf32>
    %44 = arith.mulf %41, %27 : vector<4x32xf32>
    %45 = arith.mulf %40, %42 : vector<4x32xf32>
    %46 = arith.addf %44, %45 : vector<4x32xf32>
    %47 = math.tanh %46 : vector<4x32xf32>
    %48 = arith.mulf %43, %47 : vector<4x32xf32>
    %c4 = arith.constant 4 : index
    %c0_18 = arith.constant 0 : index
    %49 = vector.load %arg14[%c4, %c0_18] : memref<64x32xf32, #tpu.memory_space<vmem>>, vector<4x32xf32>
    tpu.vector_store %arg14[%c4, %c0_18], %48 {strides = array<i32>} : memref<64x32xf32, #tpu.memory_space<vmem>>, vector<4x32xf32>,
    %50 = vector.extract_strided_slice %8 {offsets = [8, 0], sizes = [4, 128], strides = [1, 1]} : vector<64x128xf32> to vector<4x128xf32>
    %cst_19 = arith.constant dense<0.000000e+00> : vector<4x128xf32>
    %51 = tpu.matmul %48, %9, %cst_19 {dimension_numbers = #tpu.dot_dimension_numbers<[1], [0], [0], [1], [0, 0, 1, 1], [], []>} : vector<4x32xf32>, vector<32x128xf32>, vector<4x128xf32> -> vector<4x128xf32>
    %52 = arith.addf %50, %51 : vector<4x128xf32>
    %53 = arith.negf %52 : vector<4x128xf32>
    %54 = math.exp %53 : vector<4x128xf32>
    %cst_20 = arith.constant 1.000000e+00 : f32
    %55 = vector.broadcast %cst_20 : f32 to vector<4x128xf32>
    %56 = arith.addf %55, %54 : vector<4x128xf32>
    %57 = arith.divf %55, %56 : vector<4x128xf32>
    %58 = math.tanh %52 : vector<4x128xf32>
    %59 = vector.extract_strided_slice %57 {offsets = [0, 0], sizes = [4, 32], strides = [1, 1]} : vector<4x128xf32> to vector<4x32xf32>
    %60 = vector.extract_strided_slice %57 {offsets = [0, 32], sizes = [4, 32], strides = [1, 1]} : vector<4x128xf32> to vector<4x32xf32>
    %61 = vector.extract_strided_slice %58 {offsets = [0, 64], sizes = [4, 32], strides = [1, 1]} : vector<4x128xf32> to vector<4x32xf32>
    %62 = vector.extract_strided_slice %57 {offsets = [0, 96], sizes = [4, 32], strides = [1, 1]} : vector<4x128xf32> to vector<4x32xf32>
    %63 = arith.mulf %60, %46 : vector<4x32xf32>
    %64 = arith.mulf %59, %61 : vector<4x32xf32>
    %65 = arith.addf %63, %64 : vector<4x32xf32>
    %66 = math.tanh %65 : vector<4x32xf32>
    %67 = arith.mulf %62, %66 : vector<4x32xf32>
    %c8 = arith.constant 8 : index
    %c0_21 = arith.constant 0 : index
    %68 = vector.load %arg14[%c8, %c0_21] : memref<64x32xf32, #tpu.memory_space<vmem>>, vector<4x32xf32>
    tpu.vector_store %arg14[%c8, %c0_21], %67 {strides = array<i32>} : memref<64x32xf32, #tpu.memory_space<vmem>>, vector<4x32xf32>,
    %69 = vector.extract_strided_slice %8 {offsets = [12, 0], sizes = [4, 128], strides = [1, 1]} : vector<64x128xf32> to vector<4x128xf32>
    %cst_22 = arith.constant dense<0.000000e+00> : vector<4x128xf32>
    %70 = tpu.matmul %67, %9, %cst_22 {dimension_numbers = #tpu.dot_dimension_numbers<[1], [0], [0], [1], [0, 0, 1, 1], [], []>} : vector<4x32xf32>, vector<32x128xf32>, vector<4x128xf32> -> vector<4x128xf32>
    %71 = arith.addf %69, %70 : vector<4x128xf32>
    %72 = arith.negf %71 : vector<4x128xf32>
    %73 = math.exp %72 : vector<4x128xf32>
    %cst_23 = arith.constant 1.000000e+00 : f32
    %74 = vector.broadcast %cst_23 : f32 to vector<4x128xf32>
    %75 = arith.addf %74, %73 : vector<4x128xf32>
    %76 = arith.divf %74, %75 : vector<4x128xf32>
    %77 = math.tanh %71 : vector<4x128xf32>
    %78 = vector.extract_strided_slice %76 {offsets = [0, 0], sizes = [4, 32], strides = [1, 1]} : vector<4x128xf32> to vector<4x32xf32>
    %79 = vector.extract_strided_slice %76 {offsets = [0, 32], sizes = [4, 32], strides = [1, 1]} : vector<4x128xf32> to vector<4x32xf32>
    %80 = vector.extract_strided_slice %77 {offsets = [0, 64], sizes = [4, 32], strides = [1, 1]} : vector<4x128xf32> to vector<4x32xf32>
    %81 = vector.extract_strided_slice %76 {offsets = [0, 96], sizes = [4, 32], strides = [1, 1]} : vector<4x128xf32> to vector<4x32xf32>
    %82 = arith.mulf %79, %65 : vector<4x32xf32>
    %83 = arith.mulf %78, %80 : vector<4x32xf32>
    %84 = arith.addf %82, %83 : vector<4x32xf32>
    %85 = math.tanh %84 : vector<4x32xf32>
    %86 = arith.mulf %81, %85 : vector<4x32xf32>
    %c12 = arith.constant 12 : index
    %c0_24 = arith.constant 0 : index
    %87 = vector.load %arg14[%c12, %c0_24] : memref<64x32xf32, #tpu.memory_space<vmem>>, vector<4x32xf32>
    tpu.vector_store %arg14[%c12, %c0_24], %86 {strides = array<i32>} : memref<64x32xf32, #tpu.memory_space<vmem>>, vector<4x32xf32>,
    %88 = vector.extract_strided_slice %8 {offsets = [16, 0], sizes = [4, 128], strides = [1, 1]} : vector<64x128xf32> to vector<4x128xf32>
    %cst_25 = arith.constant dense<0.000000e+00> : vector<4x128xf32>
    %89 = tpu.matmul %86, %9, %cst_25 {dimension_numbers = #tpu.dot_dimension_numbers<[1], [0], [0], [1], [0, 0, 1, 1], [], []>} : vector<4x32xf32>, vector<32x128xf32>, vector<4x128xf32> -> vector<4x128xf32>
    %90 = arith.addf %88, %89 : vector<4x128xf32>
    %91 = arith.negf %90 : vector<4x128xf32>
    %92 = math.exp %91 : vector<4x128xf32>
    %cst_26 = arith.constant 1.000000e+00 : f32
    %93 = vector.broadcast %cst_26 : f32 to vector<4x128xf32>
    %94 = arith.addf %93, %92 : vector<4x128xf32>
    %95 = arith.divf %93, %94 : vector<4x128xf32>
    %96 = math.tanh %90 : vector<4x128xf32>
    %97 = vector.extract_strided_slice %95 {offsets = [0, 0], sizes = [4, 32], strides = [1, 1]} : vector<4x128xf32> to vector<4x32xf32>
    %98 = vector.extract_strided_slice %95 {offsets = [0, 32], sizes = [4, 32], strides = [1, 1]} : vector<4x128xf32> to vector<4x32xf32>
    %99 = vector.extract_strided_slice %96 {offsets = [0, 64], sizes = [4, 32], strides = [1, 1]} : vector<4x128xf32> to vector<4x32xf32>
    %100 = vector.extract_strided_slice %95 {offsets = [0, 96], sizes = [4, 32], strides = [1, 1]} : vector<4x128xf32> to vector<4x32xf32>
    %101 = arith.mulf %98, %84 : vector<4x32xf32>
    %102 = arith.mulf %97, %99 : vector<4x32xf32>
    %103 = arith.addf %101, %102 : vector<4x32xf32>
    %104 = math.tanh %103 : vector<4x32xf32>
    %105 = arith.mulf %100, %104 : vector<4x32xf32>
    %c16 = arith.constant 16 : index
    %c0_27 = arith.constant 0 : index
    %106 = vector.load %arg14[%c16, %c0_27] : memref<64x32xf32, #tpu.memory_space<vmem>>, vector<4x32xf32>
    tpu.vector_store %arg14[%c16, %c0_27], %105 {strides = array<i32>} : memref<64x32xf32, #tpu.memory_space<vmem>>, vector<4x32xf32>,
    %107 = vector.extract_strided_slice %8 {offsets = [20, 0], sizes = [4, 128], strides = [1, 1]} : vector<64x128xf32> to vector<4x128xf32>
    %cst_28 = arith.constant dense<0.000000e+00> : vector<4x128xf32>
    %108 = tpu.matmul %105, %9, %cst_28 {dimension_numbers = #tpu.dot_dimension_numbers<[1], [0], [0], [1], [0, 0, 1, 1], [], []>} : vector<4x32xf32>, vector<32x128xf32>, vector<4x128xf32> -> vector<4x128xf32>
    %109 = arith.addf %107, %108 : vector<4x128xf32>
    %110 = arith.negf %109 : vector<4x128xf32>
    %111 = math.exp %110 : vector<4x128xf32>
    %cst_29 = arith.constant 1.000000e+00 : f32
    %112 = vector.broadcast %cst_29 : f32 to vector<4x128xf32>
    %113 = arith.addf %112, %111 : vector<4x128xf32>
    %114 = arith.divf %112, %113 : vector<4x128xf32>
    %115 = math.tanh %109 : vector<4x128xf32>
    %116 = vector.extract_strided_slice %114 {offsets = [0, 0], sizes = [4, 32], strides = [1, 1]} : vector<4x128xf32> to vector<4x32xf32>
    %117 = vector.extract_strided_slice %114 {offsets = [0, 32], sizes = [4, 32], strides = [1, 1]} : vector<4x128xf32> to vector<4x32xf32>
    %118 = vector.extract_strided_slice %115 {offsets = [0, 64], sizes = [4, 32], strides = [1, 1]} : vector<4x128xf32> to vector<4x32xf32>
    %119 = vector.extract_strided_slice %114 {offsets = [0, 96], sizes = [4, 32], strides = [1, 1]} : vector<4x128xf32> to vector<4x32xf32>
    %120 = arith.mulf %117, %103 : vector<4x32xf32>
    %121 = arith.mulf %116, %118 : vector<4x32xf32>
    %122 = arith.addf %120, %121 : vector<4x32xf32>
    %123 = math.tanh %122 : vector<4x32xf32>
    %124 = arith.mulf %119, %123 : vector<4x32xf32>
    %c20 = arith.constant 20 : index
    %c0_30 = arith.constant 0 : index
    %125 = vector.load %arg14[%c20, %c0_30] : memref<64x32xf32, #tpu.memory_space<vmem>>, vector<4x32xf32>
    tpu.vector_store %arg14[%c20, %c0_30], %124 {strides = array<i32>} : memref<64x32xf32, #tpu.memory_space<vmem>>, vector<4x32xf32>,
    %126 = vector.extract_strided_slice %8 {offsets = [24, 0], sizes = [4, 128], strides = [1, 1]} : vector<64x128xf32> to vector<4x128xf32>
    %cst_31 = arith.constant dense<0.000000e+00> : vector<4x128xf32>
    %127 = tpu.matmul %124, %9, %cst_31 {dimension_numbers = #tpu.dot_dimension_numbers<[1], [0], [0], [1], [0, 0, 1, 1], [], []>} : vector<4x32xf32>, vector<32x128xf32>, vector<4x128xf32> -> vector<4x128xf32>
    %128 = arith.addf %126, %127 : vector<4x128xf32>
    %129 = arith.negf %128 : vector<4x128xf32>
    %130 = math.exp %129 : vector<4x128xf32>
    %cst_32 = arith.constant 1.000000e+00 : f32
    %131 = vector.broadcast %cst_32 : f32 to vector<4x128xf32>
    %132 = arith.addf %131, %130 : vector<4x128xf32>
    %133 = arith.divf %131, %132 : vector<4x128xf32>
    %134 = math.tanh %128 : vector<4x128xf32>
    %135 = vector.extract_strided_slice %133 {offsets = [0, 0], sizes = [4, 32], strides = [1, 1]} : vector<4x128xf32> to vector<4x32xf32>
    %136 = vector.extract_strided_slice %133 {offsets = [0, 32], sizes = [4, 32], strides = [1, 1]} : vector<4x128xf32> to vector<4x32xf32>
    %137 = vector.extract_strided_slice %134 {offsets = [0, 64], sizes = [4, 32], strides = [1, 1]} : vector<4x128xf32> to vector<4x32xf32>
    %138 = vector.extract_strided_slice %133 {offsets = [0, 96], sizes = [4, 32], strides = [1, 1]} : vector<4x128xf32> to vector<4x32xf32>
    %139 = arith.mulf %136, %122 : vector<4x32xf32>
    %140 = arith.mulf %135, %137 : vector<4x32xf32>
    %141 = arith.addf %139, %140 : vector<4x32xf32>
    %142 = math.tanh %141 : vector<4x32xf32>
    %143 = arith.mulf %138, %142 : vector<4x32xf32>
    %c24 = arith.constant 24 : index
    %c0_33 = arith.constant 0 : index
    %144 = vector.load %arg14[%c24, %c0_33] : memref<64x32xf32, #tpu.memory_space<vmem>>, vector<4x32xf32>
    tpu.vector_store %arg14[%c24, %c0_33], %143 {strides = array<i32>} : memref<64x32xf32, #tpu.memory_space<vmem>>, vector<4x32xf32>,
    %145 = vector.extract_strided_slice %8 {offsets = [28, 0], sizes = [4, 128], strides = [1, 1]} : vector<64x128xf32> to vector<4x128xf32>
    %cst_34 = arith.constant dense<0.000000e+00> : vector<4x128xf32>
    %146 = tpu.matmul %143, %9, %cst_34 {dimension_numbers = #tpu.dot_dimension_numbers<[1], [0], [0], [1], [0, 0, 1, 1], [], []>} : vector<4x32xf32>, vector<32x128xf32>, vector<4x128xf32> -> vector<4x128xf32>
    %147 = arith.addf %145, %146 : vector<4x128xf32>
    %148 = arith.negf %147 : vector<4x128xf32>
    %149 = math.exp %148 : vector<4x128xf32>
    %cst_35 = arith.constant 1.000000e+00 : f32
    %150 = vector.broadcast %cst_35 : f32 to vector<4x128xf32>
    %151 = arith.addf %150, %149 : vector<4x128xf32>
    %152 = arith.divf %150, %151 : vector<4x128xf32>
    %153 = math.tanh %147 : vector<4x128xf32>
    %154 = vector.extract_strided_slice %152 {offsets = [0, 0], sizes = [4, 32], strides = [1, 1]} : vector<4x128xf32> to vector<4x32xf32>
    %155 = vector.extract_strided_slice %152 {offsets = [0, 32], sizes = [4, 32], strides = [1, 1]} : vector<4x128xf32> to vector<4x32xf32>
    %156 = vector.extract_strided_slice %153 {offsets = [0, 64], sizes = [4, 32], strides = [1, 1]} : vector<4x128xf32> to vector<4x32xf32>
    %157 = vector.extract_strided_slice %152 {offsets = [0, 96], sizes = [4, 32], strides = [1, 1]} : vector<4x128xf32> to vector<4x32xf32>
    %158 = arith.mulf %155, %141 : vector<4x32xf32>
    %159 = arith.mulf %154, %156 : vector<4x32xf32>
    %160 = arith.addf %158, %159 : vector<4x32xf32>
    %161 = math.tanh %160 : vector<4x32xf32>
    %162 = arith.mulf %157, %161 : vector<4x32xf32>
    %c28 = arith.constant 28 : index
    %c0_36 = arith.constant 0 : index
    %163 = vector.load %arg14[%c28, %c0_36] : memref<64x32xf32, #tpu.memory_space<vmem>>, vector<4x32xf32>
    tpu.vector_store %arg14[%c28, %c0_36], %162 {strides = array<i32>} : memref<64x32xf32, #tpu.memory_space<vmem>>, vector<4x32xf32>,
    %164 = vector.extract_strided_slice %8 {offsets = [32, 0], sizes = [4, 128], strides = [1, 1]} : vector<64x128xf32> to vector<4x128xf32>
    %cst_37 = arith.constant dense<0.000000e+00> : vector<4x128xf32>
    %165 = tpu.matmul %162, %9, %cst_37 {dimension_numbers = #tpu.dot_dimension_numbers<[1], [0], [0], [1], [0, 0, 1, 1], [], []>} : vector<4x32xf32>, vector<32x128xf32>, vector<4x128xf32> -> vector<4x128xf32>
    %166 = arith.addf %164, %165 : vector<4x128xf32>
    %167 = arith.negf %166 : vector<4x128xf32>
    %168 = math.exp %167 : vector<4x128xf32>
    %cst_38 = arith.constant 1.000000e+00 : f32
    %169 = vector.broadcast %cst_38 : f32 to vector<4x128xf32>
    %170 = arith.addf %169, %168 : vector<4x128xf32>
    %171 = arith.divf %169, %170 : vector<4x128xf32>
    %172 = math.tanh %166 : vector<4x128xf32>
    %173 = vector.extract_strided_slice %171 {offsets = [0, 0], sizes = [4, 32], strides = [1, 1]} : vector<4x128xf32> to vector<4x32xf32>
    %174 = vector.extract_strided_slice %171 {offsets = [0, 32], sizes = [4, 32], strides = [1, 1]} : vector<4x128xf32> to vector<4x32xf32>
    %175 = vector.extract_strided_slice %172 {offsets = [0, 64], sizes = [4, 32], strides = [1, 1]} : vector<4x128xf32> to vector<4x32xf32>
    %176 = vector.extract_strided_slice %171 {offsets = [0, 96], sizes = [4, 32], strides = [1, 1]} : vector<4x128xf32> to vector<4x32xf32>
    %177 = arith.mulf %174, %160 : vector<4x32xf32>
    %178 = arith.mulf %173, %175 : vector<4x32xf32>
    %179 = arith.addf %177, %178 : vector<4x32xf32>
    %180 = math.tanh %179 : vector<4x32xf32>
    %181 = arith.mulf %176, %180 : vector<4x32xf32>
    %c32 = arith.constant 32 : index
    %c0_39 = arith.constant 0 : index
    %182 = vector.load %arg14[%c32, %c0_39] : memref<64x32xf32, #tpu.memory_space<vmem>>, vector<4x32xf32>
    tpu.vector_store %arg14[%c32, %c0_39], %181 {strides = array<i32>} : memref<64x32xf32, #tpu.memory_space<vmem>>, vector<4x32xf32>,
    %183 = vector.extract_strided_slice %8 {offsets = [36, 0], sizes = [4, 128], strides = [1, 1]} : vector<64x128xf32> to vector<4x128xf32>
    %cst_40 = arith.constant dense<0.000000e+00> : vector<4x128xf32>
    %184 = tpu.matmul %181, %9, %cst_40 {dimension_numbers = #tpu.dot_dimension_numbers<[1], [0], [0], [1], [0, 0, 1, 1], [], []>} : vector<4x32xf32>, vector<32x128xf32>, vector<4x128xf32> -> vector<4x128xf32>
    %185 = arith.addf %183, %184 : vector<4x128xf32>
    %186 = arith.negf %185 : vector<4x128xf32>
    %187 = math.exp %186 : vector<4x128xf32>
    %cst_41 = arith.constant 1.000000e+00 : f32
    %188 = vector.broadcast %cst_41 : f32 to vector<4x128xf32>
    %189 = arith.addf %188, %187 : vector<4x128xf32>
    %190 = arith.divf %188, %189 : vector<4x128xf32>
    %191 = math.tanh %185 : vector<4x128xf32>
    %192 = vector.extract_strided_slice %190 {offsets = [0, 0], sizes = [4, 32], strides = [1, 1]} : vector<4x128xf32> to vector<4x32xf32>
    %193 = vector.extract_strided_slice %190 {offsets = [0, 32], sizes = [4, 32], strides = [1, 1]} : vector<4x128xf32> to vector<4x32xf32>
    %194 = vector.extract_strided_slice %191 {offsets = [0, 64], sizes = [4, 32], strides = [1, 1]} : vector<4x128xf32> to vector<4x32xf32>
    %195 = vector.extract_strided_slice %190 {offsets = [0, 96], sizes = [4, 32], strides = [1, 1]} : vector<4x128xf32> to vector<4x32xf32>
    %196 = arith.mulf %193, %179 : vector<4x32xf32>
    %197 = arith.mulf %192, %194 : vector<4x32xf32>
    %198 = arith.addf %196, %197 : vector<4x32xf32>
    %199 = math.tanh %198 : vector<4x32xf32>
    %200 = arith.mulf %195, %199 : vector<4x32xf32>
    %c36 = arith.constant 36 : index
    %c0_42 = arith.constant 0 : index
    %201 = vector.load %arg14[%c36, %c0_42] : memref<64x32xf32, #tpu.memory_space<vmem>>, vector<4x32xf32>
    tpu.vector_store %arg14[%c36, %c0_42], %200 {strides = array<i32>} : memref<64x32xf32, #tpu.memory_space<vmem>>, vector<4x32xf32>,
    %202 = vector.extract_strided_slice %8 {offsets = [40, 0], sizes = [4, 128], strides = [1, 1]} : vector<64x128xf32> to vector<4x128xf32>
    %cst_43 = arith.constant dense<0.000000e+00> : vector<4x128xf32>
    %203 = tpu.matmul %200, %9, %cst_43 {dimension_numbers = #tpu.dot_dimension_numbers<[1], [0], [0], [1], [0, 0, 1, 1], [], []>} : vector<4x32xf32>, vector<32x128xf32>, vector<4x128xf32> -> vector<4x128xf32>
    %204 = arith.addf %202, %203 : vector<4x128xf32>
    %205 = arith.negf %204 : vector<4x128xf32>
    %206 = math.exp %205 : vector<4x128xf32>
    %cst_44 = arith.constant 1.000000e+00 : f32
    %207 = vector.broadcast %cst_44 : f32 to vector<4x128xf32>
    %208 = arith.addf %207, %206 : vector<4x128xf32>
    %209 = arith.divf %207, %208 : vector<4x128xf32>
    %210 = math.tanh %204 : vector<4x128xf32>
    %211 = vector.extract_strided_slice %209 {offsets = [0, 0], sizes = [4, 32], strides = [1, 1]} : vector<4x128xf32> to vector<4x32xf32>
    %212 = vector.extract_strided_slice %209 {offsets = [0, 32], sizes = [4, 32], strides = [1, 1]} : vector<4x128xf32> to vector<4x32xf32>
    %213 = vector.extract_strided_slice %210 {offsets = [0, 64], sizes = [4, 32], strides = [1, 1]} : vector<4x128xf32> to vector<4x32xf32>
    %214 = vector.extract_strided_slice %209 {offsets = [0, 96], sizes = [4, 32], strides = [1, 1]} : vector<4x128xf32> to vector<4x32xf32>
    %215 = arith.mulf %212, %198 : vector<4x32xf32>
    %216 = arith.mulf %211, %213 : vector<4x32xf32>
    %217 = arith.addf %215, %216 : vector<4x32xf32>
    %218 = math.tanh %217 : vector<4x32xf32>
    %219 = arith.mulf %214, %218 : vector<4x32xf32>
    %c40 = arith.constant 40 : index
    %c0_45 = arith.constant 0 : index
    %220 = vector.load %arg14[%c40, %c0_45] : memref<64x32xf32, #tpu.memory_space<vmem>>, vector<4x32xf32>
    tpu.vector_store %arg14[%c40, %c0_45], %219 {strides = array<i32>} : memref<64x32xf32, #tpu.memory_space<vmem>>, vector<4x32xf32>,
    %221 = vector.extract_strided_slice %8 {offsets = [44, 0], sizes = [4, 128], strides = [1, 1]} : vector<64x128xf32> to vector<4x128xf32>
    %cst_46 = arith.constant dense<0.000000e+00> : vector<4x128xf32>
    %222 = tpu.matmul %219, %9, %cst_46 {dimension_numbers = #tpu.dot_dimension_numbers<[1], [0], [0], [1], [0, 0, 1, 1], [], []>} : vector<4x32xf32>, vector<32x128xf32>, vector<4x128xf32> -> vector<4x128xf32>
    %223 = arith.addf %221, %222 : vector<4x128xf32>
    %224 = arith.negf %223 : vector<4x128xf32>
    %225 = math.exp %224 : vector<4x128xf32>
    %cst_47 = arith.constant 1.000000e+00 : f32
    %226 = vector.broadcast %cst_47 : f32 to vector<4x128xf32>
    %227 = arith.addf %226, %225 : vector<4x128xf32>
    %228 = arith.divf %226, %227 : vector<4x128xf32>
    %229 = math.tanh %223 : vector<4x128xf32>
    %230 = vector.extract_strided_slice %228 {offsets = [0, 0], sizes = [4, 32], strides = [1, 1]} : vector<4x128xf32> to vector<4x32xf32>
    %231 = vector.extract_strided_slice %228 {offsets = [0, 32], sizes = [4, 32], strides = [1, 1]} : vector<4x128xf32> to vector<4x32xf32>
    %232 = vector.extract_strided_slice %229 {offsets = [0, 64], sizes = [4, 32], strides = [1, 1]} : vector<4x128xf32> to vector<4x32xf32>
    %233 = vector.extract_strided_slice %228 {offsets = [0, 96], sizes = [4, 32], strides = [1, 1]} : vector<4x128xf32> to vector<4x32xf32>
    %234 = arith.mulf %231, %217 : vector<4x32xf32>
    %235 = arith.mulf %230, %232 : vector<4x32xf32>
    %236 = arith.addf %234, %235 : vector<4x32xf32>
    %237 = math.tanh %236 : vector<4x32xf32>
    %238 = arith.mulf %233, %237 : vector<4x32xf32>
    %c44 = arith.constant 44 : index
    %c0_48 = arith.constant 0 : index
    %239 = vector.load %arg14[%c44, %c0_48] : memref<64x32xf32, #tpu.memory_space<vmem>>, vector<4x32xf32>
    tpu.vector_store %arg14[%c44, %c0_48], %238 {strides = array<i32>} : memref<64x32xf32, #tpu.memory_space<vmem>>, vector<4x32xf32>,
    %240 = vector.extract_strided_slice %8 {offsets = [48, 0], sizes = [4, 128], strides = [1, 1]} : vector<64x128xf32> to vector<4x128xf32>
    %cst_49 = arith.constant dense<0.000000e+00> : vector<4x128xf32>
    %241 = tpu.matmul %238, %9, %cst_49 {dimension_numbers = #tpu.dot_dimension_numbers<[1], [0], [0], [1], [0, 0, 1, 1], [], []>} : vector<4x32xf32>, vector<32x128xf32>, vector<4x128xf32> -> vector<4x128xf32>
    %242 = arith.addf %240, %241 : vector<4x128xf32>
    %243 = arith.negf %242 : vector<4x128xf32>
    %244 = math.exp %243 : vector<4x128xf32>
    %cst_50 = arith.constant 1.000000e+00 : f32
    %245 = vector.broadcast %cst_50 : f32 to vector<4x128xf32>
    %246 = arith.addf %245, %244 : vector<4x128xf32>
    %247 = arith.divf %245, %246 : vector<4x128xf32>
    %248 = math.tanh %242 : vector<4x128xf32>
    %249 = vector.extract_strided_slice %247 {offsets = [0, 0], sizes = [4, 32], strides = [1, 1]} : vector<4x128xf32> to vector<4x32xf32>
    %250 = vector.extract_strided_slice %247 {offsets = [0, 32], sizes = [4, 32], strides = [1, 1]} : vector<4x128xf32> to vector<4x32xf32>
    %251 = vector.extract_strided_slice %248 {offsets = [0, 64], sizes = [4, 32], strides = [1, 1]} : vector<4x128xf32> to vector<4x32xf32>
    %252 = vector.extract_strided_slice %247 {offsets = [0, 96], sizes = [4, 32], strides = [1, 1]} : vector<4x128xf32> to vector<4x32xf32>
    %253 = arith.mulf %250, %236 : vector<4x32xf32>
    %254 = arith.mulf %249, %251 : vector<4x32xf32>
    %255 = arith.addf %253, %254 : vector<4x32xf32>
    %256 = math.tanh %255 : vector<4x32xf32>
    %257 = arith.mulf %252, %256 : vector<4x32xf32>
    %c48 = arith.constant 48 : index
    %c0_51 = arith.constant 0 : index
    %258 = vector.load %arg14[%c48, %c0_51] : memref<64x32xf32, #tpu.memory_space<vmem>>, vector<4x32xf32>
    tpu.vector_store %arg14[%c48, %c0_51], %257 {strides = array<i32>} : memref<64x32xf32, #tpu.memory_space<vmem>>, vector<4x32xf32>,
    %259 = vector.extract_strided_slice %8 {offsets = [52, 0], sizes = [4, 128], strides = [1, 1]} : vector<64x128xf32> to vector<4x128xf32>
    %cst_52 = arith.constant dense<0.000000e+00> : vector<4x128xf32>
    %260 = tpu.matmul %257, %9, %cst_52 {dimension_numbers = #tpu.dot_dimension_numbers<[1], [0], [0], [1], [0, 0, 1, 1], [], []>} : vector<4x32xf32>, vector<32x128xf32>, vector<4x128xf32> -> vector<4x128xf32>
    %261 = arith.addf %259, %260 : vector<4x128xf32>
    %262 = arith.negf %261 : vector<4x128xf32>
    %263 = math.exp %262 : vector<4x128xf32>
    %cst_53 = arith.constant 1.000000e+00 : f32
    %264 = vector.broadcast %cst_53 : f32 to vector<4x128xf32>
    %265 = arith.addf %264, %263 : vector<4x128xf32>
    %266 = arith.divf %264, %265 : vector<4x128xf32>
    %267 = math.tanh %261 : vector<4x128xf32>
    %268 = vector.extract_strided_slice %266 {offsets = [0, 0], sizes = [4, 32], strides = [1, 1]} : vector<4x128xf32> to vector<4x32xf32>
    %269 = vector.extract_strided_slice %266 {offsets = [0, 32], sizes = [4, 32], strides = [1, 1]} : vector<4x128xf32> to vector<4x32xf32>
    %270 = vector.extract_strided_slice %267 {offsets = [0, 64], sizes = [4, 32], strides = [1, 1]} : vector<4x128xf32> to vector<4x32xf32>
    %271 = vector.extract_strided_slice %266 {offsets = [0, 96], sizes = [4, 32], strides = [1, 1]} : vector<4x128xf32> to vector<4x32xf32>
    %272 = arith.mulf %269, %255 : vector<4x32xf32>
    %273 = arith.mulf %268, %270 : vector<4x32xf32>
    %274 = arith.addf %272, %273 : vector<4x32xf32>
    %275 = math.tanh %274 : vector<4x32xf32>
    %276 = arith.mulf %271, %275 : vector<4x32xf32>
    %c52 = arith.constant 52 : index
    %c0_54 = arith.constant 0 : index
    %277 = vector.load %arg14[%c52, %c0_54] : memref<64x32xf32, #tpu.memory_space<vmem>>, vector<4x32xf32>
    tpu.vector_store %arg14[%c52, %c0_54], %276 {strides = array<i32>} : memref<64x32xf32, #tpu.memory_space<vmem>>, vector<4x32xf32>,
    %278 = vector.extract_strided_slice %8 {offsets = [56, 0], sizes = [4, 128], strides = [1, 1]} : vector<64x128xf32> to vector<4x128xf32>
    %cst_55 = arith.constant dense<0.000000e+00> : vector<4x128xf32>
    %279 = tpu.matmul %276, %9, %cst_55 {dimension_numbers = #tpu.dot_dimension_numbers<[1], [0], [0], [1], [0, 0, 1, 1], [], []>} : vector<4x32xf32>, vector<32x128xf32>, vector<4x128xf32> -> vector<4x128xf32>
    %280 = arith.addf %278, %279 : vector<4x128xf32>
    %281 = arith.negf %280 : vector<4x128xf32>
    %282 = math.exp %281 : vector<4x128xf32>
    %cst_56 = arith.constant 1.000000e+00 : f32
    %283 = vector.broadcast %cst_56 : f32 to vector<4x128xf32>
    %284 = arith.addf %283, %282 : vector<4x128xf32>
    %285 = arith.divf %283, %284 : vector<4x128xf32>
    %286 = math.tanh %280 : vector<4x128xf32>
    %287 = vector.extract_strided_slice %285 {offsets = [0, 0], sizes = [4, 32], strides = [1, 1]} : vector<4x128xf32> to vector<4x32xf32>
    %288 = vector.extract_strided_slice %285 {offsets = [0, 32], sizes = [4, 32], strides = [1, 1]} : vector<4x128xf32> to vector<4x32xf32>
    %289 = vector.extract_strided_slice %286 {offsets = [0, 64], sizes = [4, 32], strides = [1, 1]} : vector<4x128xf32> to vector<4x32xf32>
    %290 = vector.extract_strided_slice %285 {offsets = [0, 96], sizes = [4, 32], strides = [1, 1]} : vector<4x128xf32> to vector<4x32xf32>
    %291 = arith.mulf %288, %274 : vector<4x32xf32>
    %292 = arith.mulf %287, %289 : vector<4x32xf32>
    %293 = arith.addf %291, %292 : vector<4x32xf32>
    %294 = math.tanh %293 : vector<4x32xf32>
    %295 = arith.mulf %290, %294 : vector<4x32xf32>
    %c56 = arith.constant 56 : index
    %c0_57 = arith.constant 0 : index
    %296 = vector.load %arg14[%c56, %c0_57] : memref<64x32xf32, #tpu.memory_space<vmem>>, vector<4x32xf32>
    tpu.vector_store %arg14[%c56, %c0_57], %295 {strides = array<i32>} : memref<64x32xf32, #tpu.memory_space<vmem>>, vector<4x32xf32>,
    %297 = vector.extract_strided_slice %8 {offsets = [60, 0], sizes = [4, 128], strides = [1, 1]} : vector<64x128xf32> to vector<4x128xf32>
    %cst_58 = arith.constant dense<0.000000e+00> : vector<4x128xf32>
    %298 = tpu.matmul %295, %9, %cst_58 {dimension_numbers = #tpu.dot_dimension_numbers<[1], [0], [0], [1], [0, 0, 1, 1], [], []>} : vector<4x32xf32>, vector<32x128xf32>, vector<4x128xf32> -> vector<4x128xf32>
    %299 = arith.addf %297, %298 : vector<4x128xf32>
    %300 = arith.negf %299 : vector<4x128xf32>
    %301 = math.exp %300 : vector<4x128xf32>
    %cst_59 = arith.constant 1.000000e+00 : f32
    %302 = vector.broadcast %cst_59 : f32 to vector<4x128xf32>
    %303 = arith.addf %302, %301 : vector<4x128xf32>
    %304 = arith.divf %302, %303 : vector<4x128xf32>
    %305 = math.tanh %299 : vector<4x128xf32>
    %306 = vector.extract_strided_slice %304 {offsets = [0, 0], sizes = [4, 32], strides = [1, 1]} : vector<4x128xf32> to vector<4x32xf32>
    %307 = vector.extract_strided_slice %304 {offsets = [0, 32], sizes = [4, 32], strides = [1, 1]} : vector<4x128xf32> to vector<4x32xf32>
    %308 = vector.extract_strided_slice %305 {offsets = [0, 64], sizes = [4, 32], strides = [1, 1]} : vector<4x128xf32> to vector<4x32xf32>
    %309 = vector.extract_strided_slice %304 {offsets = [0, 96], sizes = [4, 32], strides = [1, 1]} : vector<4x128xf32> to vector<4x32xf32>
    %310 = arith.mulf %307, %293 : vector<4x32xf32>
    %311 = arith.mulf %306, %308 : vector<4x32xf32>
    %312 = arith.addf %310, %311 : vector<4x32xf32>
    %313 = math.tanh %312 : vector<4x32xf32>
    %314 = arith.mulf %309, %313 : vector<4x32xf32>
    %c60 = arith.constant 60 : index
    %c0_60 = arith.constant 0 : index
    %315 = vector.load %arg14[%c60, %c0_60] : memref<64x32xf32, #tpu.memory_space<vmem>>, vector<4x32xf32>
    tpu.vector_store %arg14[%c60, %c0_60], %314 {strides = array<i32>} : memref<64x32xf32, #tpu.memory_space<vmem>>, vector<4x32xf32>,
    %c0_61 = arith.constant 0 : index
    %c0_62 = arith.constant 0 : index
    %316 = vector.load %arg12[%c0_61, %c0_62] : memref<4x32xf32, #tpu.memory_space<vmem>>, vector<4x32xf32>
    tpu.vector_store %arg12[%c0_61, %c0_62], %314 {strides = array<i32>} : memref<4x32xf32, #tpu.memory_space<vmem>>, vector<4x32xf32>,
    %c0_63 = arith.constant 0 : index
    %c0_64 = arith.constant 0 : index
    %317 = vector.load %arg13[%c0_63, %c0_64] : memref<4x32xf32, #tpu.memory_space<vmem>>, vector<4x32xf32>
    tpu.vector_store %arg13[%c0_63, %c0_64], %312 {strides = array<i32>} : memref<4x32xf32, #tpu.memory_space<vmem>>, vector<4x32xf32>,
    %c0_65 = arith.constant 0 : index
    %c0_66 = arith.constant 0 : index
    %318 = vector.load %arg11[%c0_65, %c0_66] : memref<4x32xf32, #tpu.memory_space<vmem>>, vector<4x32xf32>
    tpu.vector_store %arg11[%c0_65, %c0_66], %312 {strides = array<i32>} : memref<4x32xf32, #tpu.memory_space<vmem>>, vector<4x32xf32>,
    %c0_67 = arith.constant 0 : index
    %c0_68 = arith.constant 0 : index
    %319 = vector.load %arg14[%c0_67, %c0_68] : memref<64x32xf32, #tpu.memory_space<vmem>>, vector<64x32xf32>
    %c0_69 = arith.constant 0 : index
    %c0_70 = arith.constant 0 : index
    %320 = vector.load %arg10[%c0_69, %c0_70] : memref<64x32xf32, #tpu.memory_space<vmem>>, vector<64x32xf32>
    tpu.vector_store %arg10[%c0_69, %c0_70], %319 {strides = array<i32>} : memref<64x32xf32, #tpu.memory_space<vmem>>, vector<64x32xf32>,
    %c0_71 = arith.constant 0 : index
    %c0_72 = arith.constant 0 : index
    %321 = vector.load %arg7[%c0_71, %c0_72] : memref<32x128xf32, #tpu.memory_space<vmem>>, vector<32x128xf32>
    %cst_73 = arith.constant dense<0.000000e+00> : vector<64x128xf32>
    %322 = tpu.matmul %319, %321, %cst_73 {dimension_numbers = #tpu.dot_dimension_numbers<[1], [0], [0], [1], [0, 0, 1, 1], [], []>} : vector<64x32xf32>, vector<32x128xf32>, vector<64x128xf32> -> vector<64x128xf32>
    %c0_74 = arith.constant 0 : index
    %c0_75 = arith.constant 0 : index
    %323 = vector.load %arg8[%c0_74, %c0_75] : memref<1x128xf32, #tpu.memory_space<vmem>>, vector<1x128xf32>
    %324 = vector.broadcast %323 : vector<1x128xf32> to vector<64x128xf32>
    %325 = arith.addf %322, %324 : vector<64x128xf32>
    %c0_76 = arith.constant 0 : index
    %c0_77 = arith.constant 0 : index
    %326 = vector.load %arg9[%c0_76, %c0_77] : memref<64x128xf32, #tpu.memory_space<vmem>>, vector<64x128xf32>
    tpu.vector_store %arg9[%c0_76, %c0_77], %325 {strides = array<i32>} : memref<64x128xf32, #tpu.memory_space<vmem>>, vector<64x128xf32>,
    return
  }
  func.func @transform_0(%arg0: i32) -> (i32, i32) {
    %c0_i32 = arith.constant 0 : i32
    %c0_i32_0 = arith.constant 0 : i32
    return %arg0, %c0_i32 : i32, i32
  }
  func.func @transform_1(%arg0: i32) -> (i32, i32) {
    %c0_i32 = arith.constant 0 : i32
    %c0_i32_0 = arith.constant 0 : i32
    %c0_i32_1 = arith.constant 0 : i32
    return %c0_i32, %c0_i32_0 : i32, i32
  }
  func.func @transform_2(%arg0: i32) -> (i32, i32) {
    %c0_i32 = arith.constant 0 : i32
    %c0_i32_0 = arith.constant 0 : i32
    %c0_i32_1 = arith.constant 0 : i32
    return %c0_i32, %c0_i32_0 : i32, i32
  }
  func.func @transform_3(%arg0: i32) -> (i32, i32) {
    %c0_i32 = arith.constant 0 : i32
    %c0_i32_0 = arith.constant 0 : i32
    %c0_i32_1 = arith.constant 0 : i32
    return %c0_i32, %c0_i32_0 : i32, i32
  }
  func.func @transform_4(%arg0: i32) -> (i32, i32) {
    %c0_i32 = arith.constant 0 : i32
    %c0_i32_0 = arith.constant 0 : i32
    %c0_i32_1 = arith.constant 0 : i32
    return %c0_i32, %c0_i32_0 : i32, i32
  }
  func.func @transform_5(%arg0: i32) -> (i32, i32) {
    %c0_i32 = arith.constant 0 : i32
    %c0_i32_0 = arith.constant 0 : i32
    %c0_i32_1 = arith.constant 0 : i32
    return %c0_i32, %c0_i32_0 : i32, i32
  }
  func.func @transform_6(%arg0: i32) -> (i32, i32) {
    %c0_i32 = arith.constant 0 : i32
    %c0_i32_0 = arith.constant 0 : i32
    %c0_i32_1 = arith.constant 0 : i32
    return %c0_i32, %c0_i32_0 : i32, i32
  }
  func.func @transform_7(%arg0: i32) -> (i32, i32) {
    %c0_i32 = arith.constant 0 : i32
    %c0_i32_0 = arith.constant 0 : i32
    %c0_i32_1 = arith.constant 0 : i32
    return %c0_i32, %c0_i32_0 : i32, i32
  }
  func.func @transform_8(%arg0: i32) -> (i32, i32) {
    %c0_i32 = arith.constant 0 : i32
    %c0_i32_0 = arith.constant 0 : i32
    return %arg0, %c0_i32 : i32, i32
  }
  func.func @transform_9(%arg0: i32) -> (i32, i32) {
    %c0_i32 = arith.constant 0 : i32
    %c0_i32_0 = arith.constant 0 : i32
    return %arg0, %c0_i32 : i32, i32
  }
  func.func @transform_10(%arg0: i32) -> (i32, i32) {
    %c0_i32 = arith.constant 0 : i32
    %c0_i32_0 = arith.constant 0 : i32
    %c0_i32_1 = arith.constant 0 : i32
    return %c0_i32, %c0_i32_0 : i32, i32
  }
}

</mosaic_0001>

<llo_original>
// kernel: tpu_custom_call.1
$region0: #{tpu_custom_call.1}
  #allocation0 [shape = 'u32[]', space=smem, size = 0x4, offset = 0x4, fixed_abs, tag = 'smem constant byte address 0x4 - core index']
  #allocation1 [shape = 'u32[144,128]{1,0:T(1,128)}', space=vmem, size = 0x12000, scoped, tag = 'internal scratch']
  #allocation2 [shape = 'f32[4,32]{1,0:T(4,128)}', space=vmem, size = 0x800, scoped, tag = 'scratch operand']
  #allocation3 [shape = 'f32[4,32]{1,0:T(4,128)}', space=vmem, size = 0x800, scoped, tag = 'scratch operand']
  #allocation4 [shape = 'f32[64,32]{1,0:T(8,128)}', space=vmem, size = 0x8000, scoped, tag = 'scratch operand']
  %s0 = inlined_call_operand.vmem [shape: f32[64,32], index: 0, kind: input, shape index: {}]
  %s1 = inlined_call_operand.hbm [shape: f32[4,32], index: 1, kind: input, shape index: {}]
  %s2 = inlined_call_operand.vmem [shape: f32[4,32], index: 2, kind: input, shape index: {}]
  %s3 = inlined_call_operand.vmem [shape: f32[32,128], index: 3, kind: input, shape index: {}]
  %s4 = inlined_call_operand.vmem [shape: f32[32,128], index: 4, kind: input, shape index: {}]
  %s5 = inlined_call_operand.vmem [shape: f32[1,128], index: 5, kind: input, shape index: {}]
  %s6 = inlined_call_operand.vmem [shape: f32[32,128], index: 6, kind: input, shape index: {}]
  %s7 = inlined_call_operand.vmem [shape: f32[1,128], index: 7, kind: input, shape index: {}]
  %s8 = inlined_call_operand.hbm [shape: f32[64,128], index: 8, kind: output, shape index: {0}]
  %s9 = inlined_call_operand.vmem [shape: f32[64,32], index: 9, kind: output, shape index: {1}]
  %s10 = inlined_call_operand.hbm [shape: f32[4,32], index: 10, kind: output, shape index: {2}]
  %11 = xla_tuple %s8, %s9, %s10
  %s12 = sld [smem:[#allocation0]]
  $region66: #{tpu_custom_call.1} parent=0
    _
  %s14 = ssub.s32 1, %s12
  %s15 = scalar_select 0, %s14, %s12
  $region1: #{tpu_custom_call.1} parent=0
    #allocation5 [shape = 'u8[2048]{0}', space=vmem, size = 0x800, scoped, tag = 'input window, operand 1, single buffered']
    #allocation6 [shape = 's32[1]{0}', space=sflag, size = 0x4, scoped, tag = 'scoped memory for tpu_custom_call.1']
    #allocation7 [shape = 's32[1]{0}', space=sflag, size = 0x4, scoped, tag = 'scoped memory for tpu_custom_call.1']
    #allocation8 [shape = 'u8[32768]{0}', space=vmem, size = 0x8000, scoped, tag = 'output window, operand 0, single buffered']
    #allocation9 [shape = 'u8[2048]{0}', space=vmem, size = 0x800, scoped, tag = 'output window, operand 2, single buffered']
    #allocation10 [shape = 's32[1]{0}', space=sflag, size = 0x4, scoped, tag = 'scoped memory for tpu_custom_call.1']
    %16 = vsyncpa [#allocation6], 0
    %17 = vsyncpa [#allocation7], 0
    %18 = vsyncpa [#allocation10], 0
    // Predicated region
    $region2: #{tpu_custom_call.1} parent=1 // pred_check
      _
    $region3: #{tpu_custom_call.1} parent=1 // pred_check_branch
      %20 = sbr.rel (0) target = $region5
    $region4: #{tpu_custom_call.1} parent=1 // pred_region
      _
    $region5: #{tpu_custom_call.1} parent=1 // pred_fallthru
      _
    // Predicated region
    $region6: #{tpu_custom_call.1} parent=1 // pred_check
      _
    $region7: #{tpu_custom_call.1} parent=1 // pred_check_branch
      %22 = sbr.rel (0) target = $region9
    $region8: #{tpu_custom_call.1} parent=1 // pred_region
      %s24 = ssub.s32 64, 64
      %25 = vsyncadd [#allocation6], %s24
      %s27 = sshll.u32 [#allocation5], 4
      %s28 = int_to_ptr.vmem [resolvable:$true] %s27
      %30 = dma.hbm_to_vmem [thread:$0]  %s1, 64, %s28, [#allocation6]
    $region9: #{tpu_custom_call.1} parent=1 // pred_fallthru
      _
    // Predicated region
    $region10: #{tpu_custom_call.1} parent=1 // pred_check
      _
    $region11: #{tpu_custom_call.1} parent=1 // pred_check_branch
      %32 = sbr.rel (0) target = $region13
    $region12: #{tpu_custom_call.1} parent=1 // pred_region
      _
    $region13: #{tpu_custom_call.1} parent=1 // pred_fallthru
      _
    // Predicated region
    $region14: #{tpu_custom_call.1} parent=1 // pred_check
      _
    $region15: #{tpu_custom_call.1} parent=1 // pred_check_branch
      %34 = sbr.rel (0) target = $region17
    $region16: #{tpu_custom_call.1} parent=1 // pred_region
      _
    $region17: #{tpu_custom_call.1} parent=1 // pred_fallthru
      _
    // Predicated region
    $region18: #{tpu_custom_call.1} parent=1 // pred_check
      _
    $region19: #{tpu_custom_call.1} parent=1 // pred_check_branch
      %36 = sbr.rel (0) target = $region21
    $region20: #{tpu_custom_call.1} parent=1 // pred_region
      _
    $region21: #{tpu_custom_call.1} parent=1 // pred_fallthru
      _
    // Predicated region
    $region22: #{tpu_custom_call.1} parent=1 // pred_check
      _
    $region23: #{tpu_custom_call.1} parent=1 // pred_check_branch
      %38 = sbr.rel (0) target = $region25
    $region24: #{tpu_custom_call.1} parent=1 // pred_region
      _
    $region25: #{tpu_custom_call.1} parent=1 // pred_fallthru
      _
    // Predicated region
    $region26: #{tpu_custom_call.1} parent=1 // pred_check
      _
    $region27: #{tpu_custom_call.1} parent=1 // pred_check_branch
      %40 = sbr.rel (0) target = $region29
    $region28: #{tpu_custom_call.1} parent=1 // pred_region
      _
    $region29: #{tpu_custom_call.1} parent=1 // pred_fallthru
      _
    // Predicated region
    $region30: #{tpu_custom_call.1} parent=1 // pred_check
      _
    $region31: #{tpu_custom_call.1} parent=1 // pred_check_branch
      %42 = sbr.rel (0) target = $region33
    $region32: #{tpu_custom_call.1} parent=1 // pred_region
      _
    $region33: #{tpu_custom_call.1} parent=1 // pred_fallthru
      _
    // Predicated region
    $region34: #{tpu_custom_call.1} parent=1 // pred_check
      _
    $region35: #{tpu_custom_call.1} parent=1 // pred_check_branch
      %44 = sbr.rel (0) target = $region37
    $region36: #{tpu_custom_call.1} parent=1 // pred_region
      %45 = dma.done [#allocation6], 64
    $region37: #{tpu_custom_call.1} parent=1 // pred_fallthru
      _
    %p46 = scmp.eq.s32.totalorder 0, 0
    // Predicated region
    $region38: #{tpu_custom_call.1} parent=1 // pred_check
      %p47 = pneg %p46
    $region39: #{tpu_custom_call.1} parent=1 // pred_check_branch
      %49 = sbr.rel (%p47) target = $region41
    $region40: #{tpu_custom_call.1} parent=1 // pred_region
      %v50 = vld [vmem:[#allocation5] sm:$0xf]
      %vm51 = vcmask 257024
      %52 = vst.msk [vmem:[#allocation2] sm:$0xf] %vm51, %v50
      %v53 = vld [vmem:[%s2] sm:$0xf]
      %54 = vst.msk [vmem:[#allocation3] sm:$0xf] %vm51, %v53
    $region41: #{tpu_custom_call.1} parent=1 // pred_fallthru
      _
    %v55 = vld [vmem:[%s0] sm:$0xff]
    %v56 = vld [vmem:[%s0 + $0x8] sm:$0xff]
    %v57 = vld [vmem:[%s0 + $0x10] sm:$0xff]
    %v58 = vld [vmem:[%s0 + $0x18] sm:$0xff]
    %v59 = vld [vmem:[%s0 + $0x20] sm:$0xff]
    %v60 = vld [vmem:[%s0 + $0x28] sm:$0xff]
    %v61 = vld [vmem:[%s0 + $0x30] sm:$0xff]
    %v62 = vld [vmem:[%s0 + $0x38] sm:$0xff]
    %v63 = vld [vmem:[%s3] sm:$0xff]
    %v64 = vld [vmem:[%s3 + $0x8] sm:$0xff]
    %v65 = vld [vmem:[%s3 + $0x10] sm:$0xff]
    %v66 = vld [vmem:[%s3 + $0x18] sm:$0xff]
    %v67 = vld [vmem:[%s5] sm:$0x1]
    %v69 = vlaneseq
    %v70 = vshrl.u32 %v69, 7
    %v71 = vsub.s32 0, %v70
    %v72 = vrot.slane %v67, %v71
    %vm74 = vcmask 261120
    %v76 = vsel %vm74, %v55, 0
    %v79 = vsel %vm74, %v56, 0
    %v82 = vsel %vm74, %v57, 0
    %v85 = vsel %vm74, %v58, 0
    %v88 = vsel %vm74, %v59, 0
    %v91 = vsel %vm74, %v60, 0
    %v94 = vsel %vm74, %v61, 0
    %v97 = vsel %vm74, %v62, 0
    %99 = vmatprep.subr.mxu0 0.0
    %100 = vmatpush1.msra.mxu0 %v63
    %101 = vmatprep.subr.mxu0 0.0
    %102 = vmatpush1.msra.mxu0 %v64
    %103 = vmatprep.subr.mxu0 0.0
    %104 = vmatpush1.msra.mxu0 %v65
    %105 = vmatprep.subr.mxu0 0.0
    %106 = vmatpush1.msra.mxu0 %v66
    %107 = vmatprep.subr.mxu0 0.0
    %108 = vmatpush1.msra.mxu0 0.0
    %109 = vmatprep.subr.mxu0 0.0
    %110 = vmatpush1.msra.mxu0 0.0
    %111 = vmatprep.subr.mxu0 0.0
    %112 = vmatpush1.msra.mxu0 0.0
    %113 = vmatprep.subr.mxu0 0.0
    %114 = vmatpush1.msra.mxu0 0.0
    %115 = vmatprep.subr.mxu0 0.0
    %116 = vmatpush1.msra.mxu0 0.0
    %117 = vmatprep.subr.mxu0 0.0
    %118 = vmatpush1.msra.mxu0 0.0
    %119 = vmatprep.subr.mxu0 0.0
    %120 = vmatpush1.msra.mxu0 0.0
    %121 = vmatprep.subr.mxu0 0.0
    %122 = vmatpush1.msra.mxu0 0.0
    %123 = vmatprep.subr.mxu0 0.0
    %124 = vmatpush1.msra.mxu0 0.0
    %125 = vmatprep.subr.mxu0 0.0
    %126 = vmatpush1.msra.mxu0 0.0
    %127 = vmatprep.subr.mxu0 0.0
    %128 = vmatpush1.msra.mxu0 0.0
    %129 = vmatprep.subr.mxu0 0.0
    %130 = vmatpush1.msra.mxu0 0.0
    %131 = vmatprep.subr.mxu0 0.0
    %132 = vmatpush1.msra.mxu0 0.0
    %133 = vmatprep.subr.mxu0 0.0
    %134 = vmatpush1.msra.mxu0 0.0
    %135 = vmatprep.subr.mxu0 0.0
    %136 = vmatpush1.msra.mxu0 0.0
    %137 = vmatprep.subr.mxu0 0.0
    %138 = vmatpush1.msra.mxu0 0.0
    %139 = vmatprep.subr.mxu0 0.0
    %140 = vmatpush1.msra.mxu0 0.0
    %141 = vmatprep.subr.mxu0 0.0
    %142 = vmatpush1.msra.mxu0 0.0
    %143 = vmatprep.subr.mxu0 0.0
    %144 = vmatpush1.msra.mxu0 0.0
    %145 = vmatprep.subr.mxu0 0.0
    %146 = vmatpush1.msra.mxu0 0.0
    %147 = vmatprep.subr.mxu0 0.0
    %148 = vmatpush1.msra.mxu0 0.0
    %149 = vmatprep.subr.mxu0 0.0
    %150 = vmatpush1.msra.mxu0 0.0
    %151 = vmatprep.subr.mxu0 0.0
    %152 = vmatpush1.msra.mxu0 0.0
    %153 = vmatprep.subr.mxu0 0.0
    %154 = vmatpush1.msra.mxu0 0.0
    %155 = vmatprep.subr.mxu0 0.0
    %156 = vmatpush1.msra.mxu0 0.0
    %157 = vmatprep.subr.mxu0 0.0
    %158 = vmatpush1.msra.mxu0 0.0
    %159 = vmatprep.subr.mxu0 0.0
    %160 = vmatpush1.msra.mxu0 0.0
    %161 = vmatprep.subr.mxu0 0.0
    %162 = vmatpush1.msra.mxu0 0.0
    %163 = vmatprep.mubr.f32.mxu0 0.0
    %164 = vmatmul.mubr.f32.gmra.mrb[0].mxu0 %v76
    %v165 = vpop.f32.mrb[0].mxu0
    %v166 = vadd.f32 %v72, %v165
    %v167 = vpop.f32.mrb[0].mxu0
    %168 = vmatprep.mubr.f32.mxu0 0.0
    %169 = vmatmul.mubr.f32.gmra.mrb[0].mxu0 %v79
    %v170 = vpop.f32.mrb[0].mxu0
    %v171 = vadd.f32 %v72, %v170
    %v172 = vpop.f32.mrb[0].mxu0
    %173 = vmatprep.mubr.f32.mxu0 0.0
    %174 = vmatmul.mubr.f32.gmra.mrb[0].mxu0 %v82
    %v175 = vpop.f32.mrb[0].mxu0
    %v176 = vadd.f32 %v72, %v175
    %v177 = vpop.f32.mrb[0].mxu0
    %178 = vmatprep.mubr.f32.mxu0 0.0
    %179 = vmatmul.mubr.f32.gmra.mrb[0].mxu0 %v85
    %v180 = vpop.f32.mrb[0].mxu0
    %v181 = vadd.f32 %v72, %v180
    %v182 = vpop.f32.mrb[0].mxu0
    %183 = vmatprep.mubr.f32.mxu0 0.0
    %184 = vmatmul.mubr.f32.gmra.mrb[0].mxu0 %v88
    %v185 = vpop.f32.mrb[0].mxu0
    %v186 = vadd.f32 %v72, %v185
    %v187 = vpop.f32.mrb[0].mxu0
    %188 = vmatprep.mubr.f32.mxu0 0.0
    %189 = vmatmul.mubr.f32.gmra.mrb[0].mxu0 %v91
    %v190 = vpop.f32.mrb[0].mxu0
    %v191 = vadd.f32 %v72, %v190
    %v192 = vpop.f32.mrb[0].mxu0
    %193 = vmatprep.mubr.f32.mxu0 0.0
    %194 = vmatmul.mubr.f32.gmra.mrb[0].mxu0 %v94
    %v195 = vpop.f32.mrb[0].mxu0
    %v196 = vadd.f32 %v72, %v195
    %v197 = vpop.f32.mrb[0].mxu0
    %198 = vmatprep.mubr.f32.mxu0 0.0
    %199 = vmatmul.mubr.f32.gmra.mrb[0].mxu0 %v97
    %v200 = vpop.f32.mrb[0].mxu0
    %v201 = vadd.f32 %v72, %v200
    %v202 = vpop.f32.mrb[0].mxu0
    %203 = vdwg.mxu0
    %v204 = vld [vmem:[%s4] sm:$0xff]
    %v205 = vld [vmem:[%s4 + $0x8] sm:$0xff]
    %v206 = vld [vmem:[%s4 + $0x10] sm:$0xff]
    %v207 = vld [vmem:[%s4 + $0x18] sm:$0xff]
    %v208 = vld [vmem:[#allocation2] sm:$0xf]
    %v209 = vld [vmem:[#allocation3] sm:$0xf]
    %v211 = vsel %vm74, %v208, 0
    %213 = vmatprep.subr.mxu0 0.0
    %214 = vmatpush1.msra.mxu0 %v204
    %215 = vmatprep.subr.mxu0 0.0
    %216 = vmatpush1.msra.mxu0 %v205
    %217 = vmatprep.subr.mxu0 0.0
    %218 = vmatpush1.msra.mxu0 %v206
    %219 = vmatprep.subr.mxu0 0.0
    %220 = vmatpush1.msra.mxu0 %v207
    %221 = vmatprep.subr.mxu0 0.0
    %222 = vmatpush1.msra.mxu0 0.0
    %223 = vmatprep.subr.mxu0 0.0
    %224 = vmatpush1.msra.mxu0 0.0
    %225 = vmatprep.subr.mxu0 0.0
    %226 = vmatpush1.msra.mxu0 0.0
    %227 = vmatprep.subr.mxu0 0.0
    %228 = vmatpush1.msra.mxu0 0.0
    %229 = vmatprep.subr.mxu0 0.0
    %230 = vmatpush1.msra.mxu0 0.0
    %231 = vmatprep.subr.mxu0 0.0
    %232 = vmatpush1.msra.mxu0 0.0
    %233 = vmatprep.subr.mxu0 0.0
    %234 = vmatpush1.msra.mxu0 0.0
    %235 = vmatprep.subr.mxu0 0.0
    %236 = vmatpush1.msra.mxu0 0.0
    %237 = vmatprep.subr.mxu0 0.0
    %238 = vmatpush1.msra.mxu0 0.0
    %239 = vmatprep.subr.mxu0 0.0
    %240 = vmatpush1.msra.mxu0 0.0
    %241 = vmatprep.subr.mxu0 0.0
    %242 = vmatpush1.msra.mxu0 0.0
    %243 = vmatprep.subr.mxu0 0.0
    %244 = vmatpush1.msra.mxu0 0.0
    %245 = vmatprep.subr.mxu0 0.0
    %246 = vmatpush1.msra.mxu0 0.0
    %247 = vmatprep.subr.mxu0 0.0
    %248 = vmatpush1.msra.mxu0 0.0
    %249 = vmatprep.subr.mxu0 0.0
    %250 = vmatpush1.msra.mxu0 0.0
    %251 = vmatprep.subr.mxu0 0.0
    %252 = vmatpush1.msra.mxu0 0.0
    %253 = vmatprep.subr.mxu0 0.0
    %254 = vmatpush1.msra.mxu0 0.0
    %255 = vmatprep.subr.mxu0 0.0
    %256 = vmatpush1.msra.mxu0 0.0
    %257 = vmatprep.subr.mxu0 0.0
    %258 = vmatpush1.msra.mxu0 0.0
    %259 = vmatprep.subr.mxu0 0.0
    %260 = vmatpush1.msra.mxu0 0.0
    %261 = vmatprep.subr.mxu0 0.0
    %262 = vmatpush1.msra.mxu0 0.0
    %263 = vmatprep.subr.mxu0 0.0
    %264 = vmatpush1.msra.mxu0 0.0
    %265 = vmatprep.subr.mxu0 0.0
    %266 = vmatpush1.msra.mxu0 0.0
    %267 = vmatprep.subr.mxu0 0.0
    %268 = vmatpush1.msra.mxu0 0.0
    %269 = vmatprep.subr.mxu0 0.0
    %270 = vmatpush1.msra.mxu0 0.0
    %271 = vmatprep.subr.mxu0 0.0
    %272 = vmatpush1.msra.mxu0 0.0
    %273 = vmatprep.subr.mxu0 0.0
    %274 = vmatpush1.msra.mxu0 0.0
    %275 = vmatprep.subr.mxu0 0.0
    %276 = vmatpush1.msra.mxu0 0.0
    %277 = vmatprep.mubr.f32.mxu0 0.0
    %278 = vmatmul.mubr.f32.gmra.mrb[0].mxu0 %v211
    %v279 = vpop.f32.mrb[0].mxu0
    %v280 = vadd.f32 0.0, %v279
    %v281 = vpop.f32.mrb[0].mxu0
    %282 = vdwg.mxu0
    %v283 = vadd.f32 %v166, %v280
    %v284 = vxor.u32 %v283, 2147483648
    %v285 = vmul.f32 %v284, 1.442695
    %v286 = vpow.pop %v285
    %v287 = vadd.f32 %v286, 1.0
    %v288 = vrcp.pop %v287
    %v289 = vmul.f32 1.0, %v288
    %v290 = vtanh.pop %v283
    %292 = vrot.lane.b32.xlu0 %v209, 32
    %v293 = vpop.permute.xlu0 %292
    %v295 = vmul.f32 %v289, %v293
    %297 = vrot.lane.b32.xlu0 %v290, 64
    %v298 = vpop.permute.xlu0 %297
    %v300 = vmul.f32 %v289, %v298
    %302 = vrot.lane.b32.xlu0 %v300, 32
    %v303 = vpop.permute.xlu0 %302
    %v305 = vadd.f32 %v295, %v303
    %v306 = vtanh.pop %v305
    %308 = vrot.lane.b32.xlu0 %v306, 64
    %v309 = vpop.permute.xlu0 %308
    %v311 = vmul.f32 %v289, %v309
    %313 = vrot.lane.b32.xlu0 %v311, 32
    %v314 = vpop.permute.xlu0 %313
    %vm316 = vcmask 257024
    %317 = vst.msk [vmem:[#allocation4] sm:$0xf] %vm316, %v314
    %v318 = vsel %vm74, %v314, 0
    %320 = vmatprep.subr.mxu0 0.0
    %321 = vmatpush1.msra.mxu0 %v204
    %322 = vmatprep.subr.mxu0 0.0
    %323 = vmatpush1.msra.mxu0 %v205
    %324 = vmatprep.subr.mxu0 0.0
    %325 = vmatpush1.msra.mxu0 %v206
    %326 = vmatprep.subr.mxu0 0.0
    %327 = vmatpush1.msra.mxu0 %v207
    %328 = vmatprep.subr.mxu0 0.0
    %329 = vmatpush1.msra.mxu0 0.0
    %330 = vmatprep.subr.mxu0 0.0
    %331 = vmatpush1.msra.mxu0 0.0
    %332 = vmatprep.subr.mxu0 0.0
    %333 = vmatpush1.msra.mxu0 0.0
    %334 = vmatprep.subr.mxu0 0.0
    %335 = vmatpush1.msra.mxu0 0.0
    %336 = vmatprep.subr.mxu0 0.0
    %337 = vmatpush1.msra.mxu0 0.0
    %338 = vmatprep.subr.mxu0 0.0
    %339 = vmatpush1.msra.mxu0 0.0
    %340 = vmatprep.subr.mxu0 0.0
    %341 = vmatpush1.msra.mxu0 0.0
    %342 = vmatprep.subr.mxu0 0.0
    %343 = vmatpush1.msra.mxu0 0.0
    %344 = vmatprep.subr.mxu0 0.0
    %345 = vmatpush1.msra.mxu0 0.0
    %346 = vmatprep.subr.mxu0 0.0
    %347 = vmatpush1.msra.mxu0 0.0
    %348 = vmatprep.subr.mxu0 0.0
    %349 = vmatpush1.msra.mxu0 0.0
    %350 = vmatprep.subr.mxu0 0.0
    %351 = vmatpush1.msra.mxu0 0.0
    %352 = vmatprep.subr.mxu0 0.0
    %353 = vmatpush1.msra.mxu0 0.0
    %354 = vmatprep.subr.mxu0 0.0
    %355 = vmatpush1.msra.mxu0 0.0
    %356 = vmatprep.subr.mxu0 0.0
    %357 = vmatpush1.msra.mxu0 0.0
    %358 = vmatprep.subr.mxu0 0.0
    %359 = vmatpush1.msra.mxu0 0.0
    %360 = vmatprep.subr.mxu0 0.0
    %361 = vmatpush1.msra.mxu0 0.0
    %362 = vmatprep.subr.mxu0 0.0
    %363 = vmatpush1.msra.mxu0 0.0
    %364 = vmatprep.subr.mxu0 0.0
    %365 = vmatpush1.msra.mxu0 0.0
    %366 = vmatprep.subr.mxu0 0.0
    %367 = vmatpush1.msra.mxu0 0.0
    %368 = vmatprep.subr.mxu0 0.0
    %369 = vmatpush1.msra.mxu0 0.0
    %370 = vmatprep.subr.mxu0 0.0
    %371 = vmatpush1.msra.mxu0 0.0
    %372 = vmatprep.subr.mxu0 0.0
    %373 = vmatpush1.msra.mxu0 0.0
    %374 = vmatprep.subr.mxu0 0.0
    %375 = vmatpush1.msra.mxu0 0.0
    %376 = vmatprep.subr.mxu0 0.0
    %377 = vmatpush1.msra.mxu0 0.0
    %378 = vmatprep.subr.mxu0 0.0
    %379 = vmatpush1.msra.mxu0 0.0
    %380 = vmatprep.subr.mxu0 0.0
    %381 = vmatpush1.msra.mxu0 0.0
    %382 = vmatprep.subr.mxu0 0.0
    %383 = vmatpush1.msra.mxu0 0.0
    %384 = vmatprep.mubr.f32.mxu0 0.0
    %385 = vmatmul.mubr.f32.gmra.mrb[0].mxu0 %v318
    %v386 = vpop.f32.mrb[0].mxu0
    %v387 = vadd.f32 0.0, %v386
    %v388 = vpop.f32.mrb[0].mxu0
    %389 = vdwg.mxu0
    %v391 = vrot.slane %v387, 4
    %v393 = vadd.f32 %v166, %v391
    %v394 = vxor.u32 %v393, 2147483648
    %v395 = vmul.f32 %v394, 1.442695
    %v396 = vpow.pop %v395
    %v397 = vadd.f32 %v396, 1.0
    %v398 = vrcp.pop %v397
    %v399 = vmul.f32 1.0, %v398
    %v400 = vtanh.pop %v393
    %v402 = vrot.slane %v305, 4
    %v404 = vmul.f32 %v399, %v402
    %406 = vrot.lane.b32.xlu0 %v400, 64
    %v407 = vpop.permute.xlu0 %406
    %v409 = vmul.f32 %v399, %v407
    %411 = vrot.lane.b32.xlu0 %v409, 32
    %v412 = vpop.permute.xlu0 %411
    %v414 = vadd.f32 %v404, %v412
    %v415 = vtanh.pop %v414
    %417 = vrot.lane.b32.xlu0 %v415, 64
    %v418 = vpop.permute.xlu0 %417
    %v420 = vmul.f32 %v399, %v418
    %422 = vrot.lane.b32.xlu0 %v420, 32
    %v423 = vpop.permute.xlu0 %422
    %vm425 = vcmask 261124
    %426 = vst.msk [vmem:[#allocation4] sm:$0xf0] %vm425, %v423
    %v427 = vrot.slane %v420, 4
    %428 = vrot.lane.b32.xlu0 %v427, 32
    %v429 = vpop.permute.xlu0 %428
    %v430 = vsel %vm74, %v429, 0
    %432 = vmatprep.subr.mxu0 0.0
    %433 = vmatpush1.msra.mxu0 %v204
    %434 = vmatprep.subr.mxu0 0.0
    %435 = vmatpush1.msra.mxu0 %v205
    %436 = vmatprep.subr.mxu0 0.0
    %437 = vmatpush1.msra.mxu0 %v206
    %438 = vmatprep.subr.mxu0 0.0
    %439 = vmatpush1.msra.mxu0 %v207
    %440 = vmatprep.subr.mxu0 0.0
    %441 = vmatpush1.msra.mxu0 0.0
    %442 = vmatprep.subr.mxu0 0.0
    %443 = vmatpush1.msra.mxu0 0.0
    %444 = vmatprep.subr.mxu0 0.0
    %445 = vmatpush1.msra.mxu0 0.0
    %446 = vmatprep.subr.mxu0 0.0
    %447 = vmatpush1.msra.mxu0 0.0
    %448 = vmatprep.subr.mxu0 0.0
    %449 = vmatpush1.msra.mxu0 0.0
    %450 = vmatprep.subr.mxu0 0.0
    %451 = vmatpush1.msra.mxu0 0.0
    %452 = vmatprep.subr.mxu0 0.0
    %453 = vmatpush1.msra.mxu0 0.0
    %454 = vmatprep.subr.mxu0 0.0
    %455 = vmatpush1.msra.mxu0 0.0
    %456 = vmatprep.subr.mxu0 0.0
    %457 = vmatpush1.msra.mxu0 0.0
    %458 = vmatprep.subr.mxu0 0.0
    %459 = vmatpush1.msra.mxu0 0.0
    %460 = vmatprep.subr.mxu0 0.0
    %461 = vmatpush1.msra.mxu0 0.0
    %462 = vmatprep.subr.mxu0 0.0
    %463 = vmatpush1.msra.mxu0 0.0
    %464 = vmatprep.subr.mxu0 0.0
    %465 = vmatpush1.msra.mxu0 0.0
    %466 = vmatprep.subr.mxu0 0.0
    %467 = vmatpush1.msra.mxu0 0.0
    %468 = vmatprep.subr.mxu0 0.0
    %469 = vmatpush1.msra.mxu0 0.0
    %470 = vmatprep.subr.mxu0 0.0
    %471 = vmatpush1.msra.mxu0 0.0
    %472 = vmatprep.subr.mxu0 0.0
    %473 = vmatpush1.msra.mxu0 0.0
    %474 = vmatprep.subr.mxu0 0.0
    %475 = vmatpush1.msra.mxu0 0.0
    %476 = vmatprep.subr.mxu0 0.0
    %477 = vmatpush1.msra.mxu0 0.0
    %478 = vmatprep.subr.mxu0 0.0
    %479 = vmatpush1.msra.mxu0 0.0
    %480 = vmatprep.subr.mxu0 0.0
    %481 = vmatpush1.msra.mxu0 0.0
    %482 = vmatprep.subr.mxu0 0.0
    %483 = vmatpush1.msra.mxu0 0.0
    %484 = vmatprep.subr.mxu0 0.0
    %485 = vmatpush1.msra.mxu0 0.0
    %486 = vmatprep.subr.mxu0 0.0
    %487 = vmatpush1.msra.mxu0 0.0
    %488 = vmatprep.subr.mxu0 0.0
    %489 = vmatpush1.msra.mxu0 0.0
    %490 = vmatprep.subr.mxu0 0.0
    %491 = vmatpush1.msra.mxu0 0.0
    %492 = vmatprep.subr.mxu0 0.0
    %493 = vmatpush1.msra.mxu0 0.0
    %494 = vmatprep.subr.mxu0 0.0
    %495 = vmatpush1.msra.mxu0 0.0
    %496 = vmatprep.mubr.f32.mxu0 0.0
    %497 = vmatmul.mubr.f32.gmra.mrb[0].mxu0 %v430
    %v498 = vpop.f32.mrb[0].mxu0
    %v499 = vadd.f32 0.0, %v498
    %v500 = vpop.f32.mrb[0].mxu0
    %501 = vdwg.mxu0
    %v502 = vadd.f32 %v171, %v499
    %v503 = vxor.u32 %v502, 2147483648
    %v504 = vmul.f32 %v503, 1.442695
    %v505 = vpow.pop %v504
    %v506 = vadd.f32 %v505, 1.0
    %v507 = vrcp.pop %v506
    %v508 = vmul.f32 1.0, %v507
    %v509 = vtanh.pop %v502
    %v511 = vrot.slane %v414, 4
    %v513 = vmul.f32 %v508, %v511
    %515 = vrot.lane.b32.xlu0 %v509, 64
    %v516 = vpop.permute.xlu0 %515
    %v518 = vmul.f32 %v508, %v516
    %520 = vrot.lane.b32.xlu0 %v518, 32
    %v521 = vpop.permute.xlu0 %520
    %v523 = vadd.f32 %v513, %v521
    %v524 = vtanh.pop %v523
    %526 = vrot.lane.b32.xlu0 %v524, 64
    %v527 = vpop.permute.xlu0 %526
    %v529 = vmul.f32 %v508, %v527
    %531 = vrot.lane.b32.xlu0 %v529, 32
    %v532 = vpop.permute.xlu0 %531
    %534 = vst.msk [vmem:[#allocation4 + $0x8] sm:$0xf] %vm316, %v532
    %v535 = vsel %vm74, %v532, 0
    %537 = vmatprep.subr.mxu0 0.0
    %538 = vmatpush1.msra.mxu0 %v204
    %539 = vmatprep.subr.mxu0 0.0
    %540 = vmatpush1.msra.mxu0 %v205
    %541 = vmatprep.subr.mxu0 0.0
    %542 = vmatpush1.msra.mxu0 %v206
    %543 = vmatprep.subr.mxu0 0.0
    %544 = vmatpush1.msra.mxu0 %v207
    %545 = vmatprep.subr.mxu0 0.0
    %546 = vmatpush1.msra.mxu0 0.0
    %547 = vmatprep.subr.mxu0 0.0
    %548 = vmatpush1.msra.mxu0 0.0
    %549 = vmatprep.subr.mxu0 0.0
    %550 = vmatpush1.msra.mxu0 0.0
    %551 = vmatprep.subr.mxu0 0.0
    %552 = vmatpush1.msra.mxu0 0.0
    %553 = vmatprep.subr.mxu0 0.0
    %554 = vmatpush1.msra.mxu0 0.0
    %555 = vmatprep.subr.mxu0 0.0
    %556 = vmatpush1.msra.mxu0 0.0
    %557 = vmatprep.subr.mxu0 0.0
    %558 = vmatpush1.msra.mxu0 0.0
    %559 = vmatprep.subr.mxu0 0.0
    %560 = vmatpush1.msra.mxu0 0.0
    %561 = vmatprep.subr.mxu0 0.0
    %562 = vmatpush1.msra.mxu0 0.0
    %563 = vmatprep.subr.mxu0 0.0
    %564 = vmatpush1.msra.mxu0 0.0
    %565 = vmatprep.subr.mxu0 0.0
    %566 = vmatpush1.msra.mxu0 0.0
    %567 = vmatprep.subr.mxu0 0.0
    %568 = vmatpush1.msra.mxu0 0.0
    %569 = vmatprep.subr.mxu0 0.0
    %570 = vmatpush1.msra.mxu0 0.0
    %571 = vmatprep.subr.mxu0 0.0
    %572 = vmatpush1.msra.mxu0 0.0
    %573 = vmatprep.subr.mxu0 0.0
    %574 = vmatpush1.msra.mxu0 0.0
    %575 = vmatprep.subr.mxu0 0.0
    %576 = vmatpush1.msra.mxu0 0.0
    %577 = vmatprep.subr.mxu0 0.0
    %578 = vmatpush1.msra.mxu0 0.0
    %579 = vmatprep.subr.mxu0 0.0
    %580 = vmatpush1.msra.mxu0 0.0
    %581 = vmatprep.subr.mxu0 0.0
    %582 = vmatpush1.msra.mxu0 0.0
    %583 = vmatprep.subr.mxu0 0.0
    %584 = vmatpush1.msra.mxu0 0.0
    %585 = vmatprep.subr.mxu0 0.0
    %586 = vmatpush1.msra.mxu0 0.0
    %587 = vmatprep.subr.mxu0 0.0
    %588 = vmatpush1.msra.mxu0 0.0
    %589 = vmatprep.subr.mxu0 0.0
    %590 = vmatpush1.msra.mxu0 0.0
    %591 = vmatprep.subr.mxu0 0.0
    %592 = vmatpush1.msra.mxu0 0.0
    %593 = vmatprep.subr.mxu0 0.0
    %594 = vmatpush1.msra.mxu0 0.0
    %595 = vmatprep.subr.mxu0 0.0
    %596 = vmatpush1.msra.mxu0 0.0
    %597 = vmatprep.subr.mxu0 0.0
    %598 = vmatpush1.msra.mxu0 0.0
    %599 = vmatprep.subr.mxu0 0.0
    %600 = vmatpush1.msra.mxu0 0.0
    %601 = vmatprep.mubr.f32.mxu0 0.0
    %602 = vmatmul.mubr.f32.gmra.mrb[0].mxu0 %v535
    %v603 = vpop.f32.mrb[0].mxu0
    %v604 = vadd.f32 0.0, %v603
    %v605 = vpop.f32.mrb[0].mxu0
    %606 = vdwg.mxu0
    %v608 = vrot.slane %v604, 4
    %v610 = vadd.f32 %v171, %v608
    %v611 = vxor.u32 %v610, 2147483648
    %v612 = vmul.f32 %v611, 1.442695
    %v613 = vpow.pop %v612
    %v614 = vadd.f32 %v613, 1.0
    %v615 = vrcp.pop %v614
    %v616 = vmul.f32 1.0, %v615
    %v617 = vtanh.pop %v610
    %v619 = vrot.slane %v523, 4
    %v621 = vmul.f32 %v616, %v619
    %623 = vrot.lane.b32.xlu0 %v617, 64
    %v624 = vpop.permute.xlu0 %623
    %v626 = vmul.f32 %v616, %v624
    %628 = vrot.lane.b32.xlu0 %v626, 32
    %v629 = vpop.permute.xlu0 %628
    %v631 = vadd.f32 %v621, %v629
    %v632 = vtanh.pop %v631
    %634 = vrot.lane.b32.xlu0 %v632, 64
    %v635 = vpop.permute.xlu0 %634
    %v637 = vmul.f32 %v616, %v635
    %639 = vrot.lane.b32.xlu0 %v637, 32
    %v640 = vpop.permute.xlu0 %639
    %642 = vst.msk [vmem:[#allocation4 + $0x8] sm:$0xf0] %vm425, %v640
    %v643 = vrot.slane %v637, 4
    %644 = vrot.lane.b32.xlu0 %v643, 32
    %v645 = vpop.permute.xlu0 %644
    %v646 = vsel %vm74, %v645, 0
    %648 = vmatprep.subr.mxu0 0.0
    %649 = vmatpush1.msra.mxu0 %v204
    %650 = vmatprep.subr.mxu0 0.0
    %651 = vmatpush1.msra.mxu0 %v205
    %652 = vmatprep.subr.mxu0 0.0
    %653 = vmatpush1.msra.mxu0 %v206
    %654 = vmatprep.subr.mxu0 0.0
    %655 = vmatpush1.msra.mxu0 %v207
    %656 = vmatprep.subr.mxu0 0.0
    %657 = vmatpush1.msra.mxu0 0.0
    %658 = vmatprep.subr.mxu0 0.0
    %659 = vmatpush1.msra.mxu0 0.0
    %660 = vmatprep.subr.mxu0 0.0
    %661 = vmatpush1.msra.mxu0 0.0
    %662 = vmatprep.subr.mxu0 0.0
    %663 = vmatpush1.msra.mxu0 0.0
    %664 = vmatprep.subr.mxu0 0.0
    %665 = vmatpush1.msra.mxu0 0.0
    %666 = vmatprep.subr.mxu0 0.0
    %667 = vmatpush1.msra.mxu0 0.0
    %668 = vmatprep.subr.mxu0 0.0
    %669 = vmatpush1.msra.mxu0 0.0
    %670 = vmatprep.subr.mxu0 0.0
    %671 = vmatpush1.msra.mxu0 0.0
    %672 = vmatprep.subr.mxu0 0.0
    %673 = vmatpush1.msra.mxu0 0.0
    %674 = vmatprep.subr.mxu0 0.0
    %675 = vmatpush1.msra.mxu0 0.0
    %676 = vmatprep.subr.mxu0 0.0
    %677 = vmatpush1.msra.mxu0 0.0
    %678 = vmatprep.subr.mxu0 0.0
    %679 = vmatpush1.msra.mxu0 0.0
    %680 = vmatprep.subr.mxu0 0.0
    %681 = vmatpush1.msra.mxu0 0.0
    %682 = vmatprep.subr.mxu0 0.0
    %683 = vmatpush1.msra.mxu0 0.0
    %684 = vmatprep.subr.mxu0 0.0
    %685 = vmatpush1.msra.mxu0 0.0
    %686 = vmatprep.subr.mxu0 0.0
    %687 = vmatpush1.msra.mxu0 0.0
    %688 = vmatprep.subr.mxu0 0.0
    %689 = vmatpush1.msra.mxu0 0.0
    %690 = vmatprep.subr.mxu0 0.0
    %691 = vmatpush1.msra.mxu0 0.0
    %692 = vmatprep.subr.mxu0 0.0
    %693 = vmatpush1.msra.mxu0 0.0
    %694 = vmatprep.subr.mxu0 0.0
    %695 = vmatpush1.msra.mxu0 0.0
    %696 = vmatprep.subr.mxu0 0.0
    %697 = vmatpush1.msra.mxu0 0.0
    %698 = vmatprep.subr.mxu0 0.0
    %699 = vmatpush1.msra.mxu0 0.0
    %700 = vmatprep.subr.mxu0 0.0
    %701 = vmatpush1.msra.mxu0 0.0
    %702 = vmatprep.subr.mxu0 0.0
    %703 = vmatpush1.msra.mxu0 0.0
    %704 = vmatprep.subr.mxu0 0.0
    %705 = vmatpush1.msra.mxu0 0.0
    %706 = vmatprep.subr.mxu0 0.0
    %707 = vmatpush1.msra.mxu0 0.0
    %708 = vmatprep.subr.mxu0 0.0
    %709 = vmatpush1.msra.mxu0 0.0
    %710 = vmatprep.subr.mxu0 0.0
    %711 = vmatpush1.msra.mxu0 0.0
    %712 = vmatprep.mubr.f32.mxu0 0.0
    %713 = vmatmul.mubr.f32.gmra.mrb[0].mxu0 %v646
    %v714 = vpop.f32.mrb[0].mxu0
    %v715 = vadd.f32 0.0, %v714
    %v716 = vpop.f32.mrb[0].mxu0
    %717 = vdwg.mxu0
    %v718 = vadd.f32 %v176, %v715
    %v719 = vxor.u32 %v718, 2147483648
    %v720 = vmul.f32 %v719, 1.442695
    %v721 = vpow.pop %v720
    %v722 = vadd.f32 %v721, 1.0
    %v723 = vrcp.pop %v722
    %v724 = vmul.f32 1.0, %v723
    %v725 = vtanh.pop %v718
    %v727 = vrot.slane %v631, 4
    %v729 = vmul.f32 %v724, %v727
    %731 = vrot.lane.b32.xlu0 %v725, 64
    %v732 = vpop.permute.xlu0 %731
    %v734 = vmul.f32 %v724, %v732
    %736 = vrot.lane.b32.xlu0 %v734, 32
    %v737 = vpop.permute.xlu0 %736
    %v739 = vadd.f32 %v729, %v737
    %v740 = vtanh.pop %v739
    %742 = vrot.lane.b32.xlu0 %v740, 64
    %v743 = vpop.permute.xlu0 %742
    %v745 = vmul.f32 %v724, %v743
    %747 = vrot.lane.b32.xlu0 %v745, 32
    %v748 = vpop.permute.xlu0 %747
    %750 = vst.msk [vmem:[#allocation4 + $0x10] sm:$0xf] %vm316, %v748
    %v751 = vsel %vm74, %v748, 0
    %753 = vmatprep.subr.mxu0 0.0
    %754 = vmatpush1.msra.mxu0 %v204
    %755 = vmatprep.subr.mxu0 0.0
    %756 = vmatpush1.msra.mxu0 %v205
    %757 = vmatprep.subr.mxu0 0.0
    %758 = vmatpush1.msra.mxu0 %v206
    %759 = vmatprep.subr.mxu0 0.0
    %760 = vmatpush1.msra.mxu0 %v207
    %761 = vmatprep.subr.mxu0 0.0
    %762 = vmatpush1.msra.mxu0 0.0
    %763 = vmatprep.subr.mxu0 0.0
    %764 = vmatpush1.msra.mxu0 0.0
    %765 = vmatprep.subr.mxu0 0.0
    %766 = vmatpush1.msra.mxu0 0.0
    %767 = vmatprep.subr.mxu0 0.0
    %768 = vmatpush1.msra.mxu0 0.0
    %769 = vmatprep.subr.mxu0 0.0
    %770 = vmatpush1.msra.mxu0 0.0
    %771 = vmatprep.subr.mxu0 0.0
    %772 = vmatpush1.msra.mxu0 0.0
    %773 = vmatprep.subr.mxu0 0.0
    %774 = vmatpush1.msra.mxu0 0.0
    %775 = vmatprep.subr.mxu0 0.0
    %776 = vmatpush1.msra.mxu0 0.0
    %777 = vmatprep.subr.mxu0 0.0
    %778 = vmatpush1.msra.mxu0 0.0
    %779 = vmatprep.subr.mxu0 0.0
    %780 = vmatpush1.msra.mxu0 0.0
    %781 = vmatprep.subr.mxu0 0.0
    %782 = vmatpush1.msra.mxu0 0.0
    %783 = vmatprep.subr.mxu0 0.0
    %784 = vmatpush1.msra.mxu0 0.0
    %785 = vmatprep.subr.mxu0 0.0
    %786 = vmatpush1.msra.mxu0 0.0
    %787 = vmatprep.subr.mxu0 0.0
    %788 = vmatpush1.msra.mxu0 0.0
    %789 = vmatprep.subr.mxu0 0.0
    %790 = vmatpush1.msra.mxu0 0.0
    %791 = vmatprep.subr.mxu0 0.0
    %792 = vmatpush1.msra.mxu0 0.0
    %793 = vmatprep.subr.mxu0 0.0
    %794 = vmatpush1.msra.mxu0 0.0
    %795 = vmatprep.subr.mxu0 0.0
    %796 = vmatpush1.msra.mxu0 0.0
    %797 = vmatprep.subr.mxu0 0.0
    %798 = vmatpush1.msra.mxu0 0.0
    %799 = vmatprep.subr.mxu0 0.0
    %800 = vmatpush1.msra.mxu0 0.0
    %801 = vmatprep.subr.mxu0 0.0
    %802 = vmatpush1.msra.mxu0 0.0
    %803 = vmatprep.subr.mxu0 0.0
    %804 = vmatpush1.msra.mxu0 0.0
    %805 = vmatprep.subr.mxu0 0.0
    %806 = vmatpush1.msra.mxu0 0.0
    %807 = vmatprep.subr.mxu0 0.0
    %808 = vmatpush1.msra.mxu0 0.0
    %809 = vmatprep.subr.mxu0 0.0
    %810 = vmatpush1.msra.mxu0 0.0
    %811 = vmatprep.subr.mxu0 0.0
    %812 = vmatpush1.msra.mxu0 0.0
    %813 = vmatprep.subr.mxu0 0.0
    %814 = vmatpush1.msra.mxu0 0.0
    %815 = vmatprep.subr.mxu0 0.0
    %816 = vmatpush1.msra.mxu0 0.0
    %817 = vmatprep.mubr.f32.mxu0 0.0
    %818 = vmatmul.mubr.f32.gmra.mrb[0].mxu0 %v751
    %v819 = vpop.f32.mrb[0].mxu0
    %v820 = vadd.f32 0.0, %v819
    %v821 = vpop.f32.mrb[0].mxu0
    %822 = vdwg.mxu0
    %v824 = vrot.slane %v820, 4
    %v826 = vadd.f32 %v176, %v824
    %v827 = vxor.u32 %v826, 2147483648
    %v828 = vmul.f32 %v827, 1.442695
    %v829 = vpow.pop %v828
    %v830 = vadd.f32 %v829, 1.0
    %v831 = vrcp.pop %v830
    %v832 = vmul.f32 1.0, %v831
    %v833 = vtanh.pop %v826
    %v835 = vrot.slane %v739, 4
    %v837 = vmul.f32 %v832, %v835
    %839 = vrot.lane.b32.xlu0 %v833, 64
    %v840 = vpop.permute.xlu0 %839
    %v842 = vmul.f32 %v832, %v840
    %844 = vrot.lane.b32.xlu0 %v842, 32
    %v845 = vpop.permute.xlu0 %844
    %v847 = vadd.f32 %v837, %v845
    %v848 = vtanh.pop %v847
    %850 = vrot.lane.b32.xlu0 %v848, 64
    %v851 = vpop.permute.xlu0 %850
    %v853 = vmul.f32 %v832, %v851
    %855 = vrot.lane.b32.xlu0 %v853, 32
    %v856 = vpop.permute.xlu0 %855
    %858 = vst.msk [vmem:[#allocation4 + $0x10] sm:$0xf0] %vm425, %v856
    %v859 = vrot.slane %v853, 4
    %860 = vrot.lane.b32.xlu0 %v859, 32
    %v861 = vpop.permute.xlu0 %860
    %v862 = vsel %vm74, %v861, 0
    %864 = vmatprep.subr.mxu0 0.0
    %865 = vmatpush1.msra.mxu0 %v204
    %866 = vmatprep.subr.mxu0 0.0
    %867 = vmatpush1.msra.mxu0 %v205
    %868 = vmatprep.subr.mxu0 0.0
    %869 = vmatpush1.msra.mxu0 %v206
    %870 = vmatprep.subr.mxu0 0.0
    %871 = vmatpush1.msra.mxu0 %v207
    %872 = vmatprep.subr.mxu0 0.0
    %873 = vmatpush1.msra.mxu0 0.0
    %874 = vmatprep.subr.mxu0 0.0
    %875 = vmatpush1.msra.mxu0 0.0
    %876 = vmatprep.subr.mxu0 0.0
    %877 = vmatpush1.msra.mxu0 0.0
    %878 = vmatprep.subr.mxu0 0.0
    %879 = vmatpush1.msra.mxu0 0.0
    %880 = vmatprep.subr.mxu0 0.0
    %881 = vmatpush1.msra.mxu0 0.0
    %882 = vmatprep.subr.mxu0 0.0
    %883 = vmatpush1.msra.mxu0 0.0
    %884 = vmatprep.subr.mxu0 0.0
    %885 = vmatpush1.msra.mxu0 0.0
    %886 = vmatprep.subr.mxu0 0.0
    %887 = vmatpush1.msra.mxu0 0.0
    %888 = vmatprep.subr.mxu0 0.0
    %889 = vmatpush1.msra.mxu0 0.0
    %890 = vmatprep.subr.mxu0 0.0
    %891 = vmatpush1.msra.mxu0 0.0
    %892 = vmatprep.subr.mxu0 0.0
    %893 = vmatpush1.msra.mxu0 0.0
    %894 = vmatprep.subr.mxu0 0.0
    %895 = vmatpush1.msra.mxu0 0.0
    %896 = vmatprep.subr.mxu0 0.0
    %897 = vmatpush1.msra.mxu0 0.0
    %898 = vmatprep.subr.mxu0 0.0
    %899 = vmatpush1.msra.mxu0 0.0
    %900 = vmatprep.subr.mxu0 0.0
    %901 = vmatpush1.msra.mxu0 0.0
    %902 = vmatprep.subr.mxu0 0.0
    %903 = vmatpush1.msra.mxu0 0.0
    %904 = vmatprep.subr.mxu0 0.0
    %905 = vmatpush1.msra.mxu0 0.0
    %906 = vmatprep.subr.mxu0 0.0
    %907 = vmatpush1.msra.mxu0 0.0
    %908 = vmatprep.subr.mxu0 0.0
    %909 = vmatpush1.msra.mxu0 0.0
    %910 = vmatprep.subr.mxu0 0.0
    %911 = vmatpush1.msra.mxu0 0.0
    %912 = vmatprep.subr.mxu0 0.0
    %913 = vmatpush1.msra.mxu0 0.0
    %914 = vmatprep.subr.mxu0 0.0
    %915 = vmatpush1.msra.mxu0 0.0
    %916 = vmatprep.subr.mxu0 0.0
    %917 = vmatpush1.msra.mxu0 0.0
    %918 = vmatprep.subr.mxu0 0.0
    %919 = vmatpush1.msra.mxu0 0.0
    %920 = vmatprep.subr.mxu0 0.0
    %921 = vmatpush1.msra.mxu0 0.0
    %922 = vmatprep.subr.mxu0 0.0
    %923 = vmatpush1.msra.mxu0 0.0
    %924 = vmatprep.subr.mxu0 0.0
    %925 = vmatpush1.msra.mxu0 0.0
    %926 = vmatprep.subr.mxu0 0.0
    %927 = vmatpush1.msra.mxu0 0.0
    %928 = vmatprep.mubr.f32.mxu0 0.0
    %929 = vmatmul.mubr.f32.gmra.mrb[0].mxu0 %v862
    %v930 = vpop.f32.mrb[0].mxu0
    %v931 = vadd.f32 0.0, %v930
    %v932 = vpop.f32.mrb[0].mxu0
    %933 = vdwg.mxu0
    %v934 = vadd.f32 %v181, %v931
    %v935 = vxor.u32 %v934, 2147483648
    %v936 = vmul.f32 %v935, 1.442695
    %v937 = vpow.pop %v936
    %v938 = vadd.f32 %v937, 1.0
    %v939 = vrcp.pop %v938
    %v940 = vmul.f32 1.0, %v939
    %v941 = vtanh.pop %v934
    %v943 = vrot.slane %v847, 4
    %v945 = vmul.f32 %v940, %v943
    %947 = vrot.lane.b32.xlu0 %v941, 64
    %v948 = vpop.permute.xlu0 %947
    %v950 = vmul.f32 %v940, %v948
    %952 = vrot.lane.b32.xlu0 %v950, 32
    %v953 = vpop.permute.xlu0 %952
    %v955 = vadd.f32 %v945, %v953
    %v956 = vtanh.pop %v955
    %958 = vrot.lane.b32.xlu0 %v956, 64
    %v959 = vpop.permute.xlu0 %958
    %v961 = vmul.f32 %v940, %v959
    %963 = vrot.lane.b32.xlu0 %v961, 32
    %v964 = vpop.permute.xlu0 %963
    %966 = vst.msk [vmem:[#allocation4 + $0x18] sm:$0xf] %vm316, %v964
    %v967 = vsel %vm74, %v964, 0
    %969 = vmatprep.subr.mxu0 0.0
    %970 = vmatpush1.msra.mxu0 %v204
    %971 = vmatprep.subr.mxu0 0.0
    %972 = vmatpush1.msra.mxu0 %v205
    %973 = vmatprep.subr.mxu0 0.0
    %974 = vmatpush1.msra.mxu0 %v206
    %975 = vmatprep.subr.mxu0 0.0
    %976 = vmatpush1.msra.mxu0 %v207
    %977 = vmatprep.subr.mxu0 0.0
    %978 = vmatpush1.msra.mxu0 0.0
    %979 = vmatprep.subr.mxu0 0.0
    %980 = vmatpush1.msra.mxu0 0.0
    %981 = vmatprep.subr.mxu0 0.0
    %982 = vmatpush1.msra.mxu0 0.0
    %983 = vmatprep.subr.mxu0 0.0
    %984 = vmatpush1.msra.mxu0 0.0
    %985 = vmatprep.subr.mxu0 0.0
    %986 = vmatpush1.msra.mxu0 0.0
    %987 = vmatprep.subr.mxu0 0.0
    %988 = vmatpush1.msra.mxu0 0.0
    %989 = vmatprep.subr.mxu0 0.0
    %990 = vmatpush1.msra.mxu0 0.0
    %991 = vmatprep.subr.mxu0 0.0
    %992 = vmatpush1.msra.mxu0 0.0
    %993 = vmatprep.subr.mxu0 0.0
    %994 = vmatpush1.msra.mxu0 0.0
    %995 = vmatprep.subr.mxu0 0.0
    %996 = vmatpush1.msra.mxu0 0.0
    %997 = vmatprep.subr.mxu0 0.0
    %998 = vmatpush1.msra.mxu0 0.0
    %999 = vmatprep.subr.mxu0 0.0
    %1000 = vmatpush1.msra.mxu0 0.0
    %1001 = vmatprep.subr.mxu0 0.0
    %1002 = vmatpush1.msra.mxu0 0.0
    %1003 = vmatprep.subr.mxu0 0.0
    %1004 = vmatpush1.msra.mxu0 0.0
    %1005 = vmatprep.subr.mxu0 0.0
    %1006 = vmatpush1.msra.mxu0 0.0
    %1007 = vmatprep.subr.mxu0 0.0
    %1008 = vmatpush1.msra.mxu0 0.0
    %1009 = vmatprep.subr.mxu0 0.0
    %1010 = vmatpush1.msra.mxu0 0.0
    %1011 = vmatprep.subr.mxu0 0.0
    %1012 = vmatpush1.msra.mxu0 0.0
    %1013 = vmatprep.subr.mxu0 0.0
    %1014 = vmatpush1.msra.mxu0 0.0
    %1015 = vmatprep.subr.mxu0 0.0
    %1016 = vmatpush1.msra.mxu0 0.0
    %1017 = vmatprep.subr.mxu0 0.0
    %1018 = vmatpush1.msra.mxu0 0.0
    %1019 = vmatprep.subr.mxu0 0.0
    %1020 = vmatpush1.msra.mxu0 0.0
    %1021 = vmatprep.subr.mxu0 0.0
    %1022 = vmatpush1.msra.mxu0 0.0
    %1023 = vmatprep.subr.mxu0 0.0
    %1024 = vmatpush1.msra.mxu0 0.0
    %1025 = vmatprep.subr.mxu0 0.0
    %1026 = vmatpush1.msra.mxu0 0.0
    %1027 = vmatprep.subr.mxu0 0.0
    %1028 = vmatpush1.msra.mxu0 0.0
    %1029 = vmatprep.subr.mxu0 0.0
    %1030 = vmatpush1.msra.mxu0 0.0
    %1031 = vmatprep.subr.mxu0 0.0
    %1032 = vmatpush1.msra.mxu0 0.0
    %1033 = vmatprep.mubr.f32.mxu0 0.0
    %1034 = vmatmul.mubr.f32.gmra.mrb[0].mxu0 %v967
    %v1035 = vpop.f32.mrb[0].mxu0
    %v1036 = vadd.f32 0.0, %v1035
    %v1037 = vpop.f32.mrb[0].mxu0
    %1038 = vdwg.mxu0
    %v1040 = vrot.slane %v1036, 4
    %v1042 = vadd.f32 %v181, %v1040
    %v1043 = vxor.u32 %v1042, 2147483648
    %v1044 = vmul.f32 %v1043, 1.442695
    %v1045 = vpow.pop %v1044
    %v1046 = vadd.f32 %v1045, 1.0
    %v1047 = vrcp.pop %v1046
    %v1048 = vmul.f32 1.0, %v1047
    %v1049 = vtanh.pop %v1042
    %v1051 = vrot.slane %v955, 4
    %v1053 = vmul.f32 %v1048, %v1051
    %1055 = vrot.lane.b32.xlu0 %v1049, 64
    %v1056 = vpop.permute.xlu0 %1055
    %v1058 = vmul.f32 %v1048, %v1056
    %1060 = vrot.lane.b32.xlu0 %v1058, 32
    %v1061 = vpop.permute.xlu0 %1060
    %v1063 = vadd.f32 %v1053, %v1061
    %v1064 = vtanh.pop %v1063
    %1066 = vrot.lane.b32.xlu0 %v1064, 64
    %v1067 = vpop.permute.xlu0 %1066
    %v1069 = vmul.f32 %v1048, %v1067
    %1071 = vrot.lane.b32.xlu0 %v1069, 32
    %v1072 = vpop.permute.xlu0 %1071
    %1074 = vst.msk [vmem:[#allocation4 + $0x18] sm:$0xf0] %vm425, %v1072
    %v1075 = vrot.slane %v1069, 4
    %1076 = vrot.lane.b32.xlu0 %v1075, 32
    %v1077 = vpop.permute.xlu0 %1076
    %v1078 = vsel %vm74, %v1077, 0
    %1080 = vmatprep.subr.mxu0 0.0
    %1081 = vmatpush1.msra.mxu0 %v204
    %1082 = vmatprep.subr.mxu0 0.0
    %1083 = vmatpush1.msra.mxu0 %v205
    %1084 = vmatprep.subr.mxu0 0.0
    %1085 = vmatpush1.msra.mxu0 %v206
    %1086 = vmatprep.subr.mxu0 0.0
    %1087 = vmatpush1.msra.mxu0 %v207
    %1088 = vmatprep.subr.mxu0 0.0
    %1089 = vmatpush1.msra.mxu0 0.0
    %1090 = vmatprep.subr.mxu0 0.0
    %1091 = vmatpush1.msra.mxu0 0.0
    %1092 = vmatprep.subr.mxu0 0.0
    %1093 = vmatpush1.msra.mxu0 0.0
    %1094 = vmatprep.subr.mxu0 0.0
    %1095 = vmatpush1.msra.mxu0 0.0
    %1096 = vmatprep.subr.mxu0 0.0
    %1097 = vmatpush1.msra.mxu0 0.0
    %1098 = vmatprep.subr.mxu0 0.0
    %1099 = vmatpush1.msra.mxu0 0.0
    %1100 = vmatprep.subr.mxu0 0.0
    %1101 = vmatpush1.msra.mxu0 0.0
    %1102 = vmatprep.subr.mxu0 0.0
    %1103 = vmatpush1.msra.mxu0 0.0
    %1104 = vmatprep.subr.mxu0 0.0
    %1105 = vmatpush1.msra.mxu0 0.0
    %1106 = vmatprep.subr.mxu0 0.0
    %1107 = vmatpush1.msra.mxu0 0.0
    %1108 = vmatprep.subr.mxu0 0.0
    %1109 = vmatpush1.msra.mxu0 0.0
    %1110 = vmatprep.subr.mxu0 0.0
    %1111 = vmatpush1.msra.mxu0 0.0
    %1112 = vmatprep.subr.mxu0 0.0
    %1113 = vmatpush1.msra.mxu0 0.0
    %1114 = vmatprep.subr.mxu0 0.0
    %1115 = vmatpush1.msra.mxu0 0.0
    %1116 = vmatprep.subr.mxu0 0.0
    %1117 = vmatpush1.msra.mxu0 0.0
    %1118 = vmatprep.subr.mxu0 0.0
    %1119 = vmatpush1.msra.mxu0 0.0
    %1120 = vmatprep.subr.mxu0 0.0
    %1121 = vmatpush1.msra.mxu0 0.0
    %1122 = vmatprep.subr.mxu0 0.0
    %1123 = vmatpush1.msra.mxu0 0.0
    %1124 = vmatprep.subr.mxu0 0.0
    %1125 = vmatpush1.msra.mxu0 0.0
    %1126 = vmatprep.subr.mxu0 0.0
    %1127 = vmatpush1.msra.mxu0 0.0
    %1128 = vmatprep.subr.mxu0 0.0
    %1129 = vmatpush1.msra.mxu0 0.0
    %1130 = vmatprep.subr.mxu0 0.0
    %1131 = vmatpush1.msra.mxu0 0.0
    %1132 = vmatprep.subr.mxu0 0.0
    %1133 = vmatpush1.msra.mxu0 0.0
    %1134 = vmatprep.subr.mxu0 0.0
    %1135 = vmatpush1.msra.mxu0 0.0
    %1136 = vmatprep.subr.mxu0 0.0
    %1137 = vmatpush1.msra.mxu0 0.0
    %1138 = vmatprep.subr.mxu0 0.0
    %1139 = vmatpush1.msra.mxu0 0.0
    %1140 = vmatprep.subr.mxu0 0.0
    %1141 = vmatpush1.msra.mxu0 0.0
    %1142 = vmatprep.subr.mxu0 0.0
    %1143 = vmatpush1.msra.mxu0 0.0
    %1144 = vmatprep.mubr.f32.mxu0 0.0
    %1145 = vmatmul.mubr.f32.gmra.mrb[0].mxu0 %v1078
    %v1146 = vpop.f32.mrb[0].mxu0
    %v1147 = vadd.f32 0.0, %v1146
    %v1148 = vpop.f32.mrb[0].mxu0
    %1149 = vdwg.mxu0
    %v1150 = vadd.f32 %v186, %v1147
    %v1151 = vxor.u32 %v1150, 2147483648
    %v1152 = vmul.f32 %v1151, 1.442695
    %v1153 = vpow.pop %v1152
    %v1154 = vadd.f32 %v1153, 1.0
    %v1155 = vrcp.pop %v1154
    %v1156 = vmul.f32 1.0, %v1155
    %v1157 = vtanh.pop %v1150
    %v1159 = vrot.slane %v1063, 4
    %v1161 = vmul.f32 %v1156, %v1159
    %1163 = vrot.lane.b32.xlu0 %v1157, 64
    %v1164 = vpop.permute.xlu0 %1163
    %v1166 = vmul.f32 %v1156, %v1164
    %1168 = vrot.lane.b32.xlu0 %v1166, 32
    %v1169 = vpop.permute.xlu0 %1168
    %v1171 = vadd.f32 %v1161, %v1169
    %v1172 = vtanh.pop %v1171
    %1174 = vrot.lane.b32.xlu0 %v1172, 64
    %v1175 = vpop.permute.xlu0 %1174
    %v1177 = vmul.f32 %v1156, %v1175
    %1179 = vrot.lane.b32.xlu0 %v1177, 32
    %v1180 = vpop.permute.xlu0 %1179
    %1182 = vst.msk [vmem:[#allocation4 + $0x20] sm:$0xf] %vm316, %v1180
    %v1183 = vsel %vm74, %v1180, 0
    %1185 = vmatprep.subr.mxu0 0.0
    %1186 = vmatpush1.msra.mxu0 %v204
    %1187 = vmatprep.subr.mxu0 0.0
    %1188 = vmatpush1.msra.mxu0 %v205
    %1189 = vmatprep.subr.mxu0 0.0
    %1190 = vmatpush1.msra.mxu0 %v206
    %1191 = vmatprep.subr.mxu0 0.0
    %1192 = vmatpush1.msra.mxu0 %v207
    %1193 = vmatprep.subr.mxu0 0.0
    %1194 = vmatpush1.msra.mxu0 0.0
    %1195 = vmatprep.subr.mxu0 0.0
    %1196 = vmatpush1.msra.mxu0 0.0
    %1197 = vmatprep.subr.mxu0 0.0
    %1198 = vmatpush1.msra.mxu0 0.0
    %1199 = vmatprep.subr.mxu0 0.0
    %1200 = vmatpush1.msra.mxu0 0.0
    %1201 = vmatprep.subr.mxu0 0.0
    %1202 = vmatpush1.msra.mxu0 0.0
    %1203 = vmatprep.subr.mxu0 0.0
    %1204 = vmatpush1.msra.mxu0 0.0
    %1205 = vmatprep.subr.mxu0 0.0
    %1206 = vmatpush1.msra.mxu0 0.0
    %1207 = vmatprep.subr.mxu0 0.0
    %1208 = vmatpush1.msra.mxu0 0.0
    %1209 = vmatprep.subr.mxu0 0.0
    %1210 = vmatpush1.msra.mxu0 0.0
    %1211 = vmatprep.subr.mxu0 0.0
    %1212 = vmatpush1.msra.mxu0 0.0
    %1213 = vmatprep.subr.mxu0 0.0
    %1214 = vmatpush1.msra.mxu0 0.0
    %1215 = vmatprep.subr.mxu0 0.0
    %1216 = vmatpush1.msra.mxu0 0.0
    %1217 = vmatprep.subr.mxu0 0.0
    %1218 = vmatpush1.msra.mxu0 0.0
    %1219 = vmatprep.subr.mxu0 0.0
    %1220 = vmatpush1.msra.mxu0 0.0
    %1221 = vmatprep.subr.mxu0 0.0
    %1222 = vmatpush1.msra.mxu0 0.0
    %1223 = vmatprep.subr.mxu0 0.0
    %1224 = vmatpush1.msra.mxu0 0.0
    %1225 = vmatprep.subr.mxu0 0.0
    %1226 = vmatpush1.msra.mxu0 0.0
    %1227 = vmatprep.subr.mxu0 0.0
    %1228 = vmatpush1.msra.mxu0 0.0
    %1229 = vmatprep.subr.mxu0 0.0
    %1230 = vmatpush1.msra.mxu0 0.0
    %1231 = vmatprep.subr.mxu0 0.0
    %1232 = vmatpush1.msra.mxu0 0.0
    %1233 = vmatprep.subr.mxu0 0.0
    %1234 = vmatpush1.msra.mxu0 0.0
    %1235 = vmatprep.subr.mxu0 0.0
    %1236 = vmatpush1.msra.mxu0 0.0
    %1237 = vmatprep.subr.mxu0 0.0
    %1238 = vmatpush1.msra.mxu0 0.0
    %1239 = vmatprep.subr.mxu0 0.0
    %1240 = vmatpush1.msra.mxu0 0.0
    %1241 = vmatprep.subr.mxu0 0.0
    %1242 = vmatpush1.msra.mxu0 0.0
    %1243 = vmatprep.subr.mxu0 0.0
    %1244 = vmatpush1.msra.mxu0 0.0
    %1245 = vmatprep.subr.mxu0 0.0
    %1246 = vmatpush1.msra.mxu0 0.0
    %1247 = vmatprep.subr.mxu0 0.0
    %1248 = vmatpush1.msra.mxu0 0.0
    %1249 = vmatprep.mubr.f32.mxu0 0.0
    %1250 = vmatmul.mubr.f32.gmra.mrb[0].mxu0 %v1183
    %v1251 = vpop.f32.mrb[0].mxu0
    %v1252 = vadd.f32 0.0, %v1251
    %v1253 = vpop.f32.mrb[0].mxu0
    %1254 = vdwg.mxu0
    %v1256 = vrot.slane %v1252, 4
    %v1258 = vadd.f32 %v186, %v1256
    %v1259 = vxor.u32 %v1258, 2147483648
    %v1260 = vmul.f32 %v1259, 1.442695
    %v1261 = vpow.pop %v1260
    %v1262 = vadd.f32 %v1261, 1.0
    %v1263 = vrcp.pop %v1262
    %v1264 = vmul.f32 1.0, %v1263
    %v1265 = vtanh.pop %v1258
    %v1267 = vrot.slane %v1171, 4
    %v1269 = vmul.f32 %v1264, %v1267
    %1271 = vrot.lane.b32.xlu0 %v1265, 64
    %v1272 = vpop.permute.xlu0 %1271
    %v1274 = vmul.f32 %v1264, %v1272
    %1276 = vrot.lane.b32.xlu0 %v1274, 32
    %v1277 = vpop.permute.xlu0 %1276
    %v1279 = vadd.f32 %v1269, %v1277
    %v1280 = vtanh.pop %v1279
    %1282 = vrot.lane.b32.xlu0 %v1280, 64
    %v1283 = vpop.permute.xlu0 %1282
    %v1285 = vmul.f32 %v1264, %v1283
    %1287 = vrot.lane.b32.xlu0 %v1285, 32
    %v1288 = vpop.permute.xlu0 %1287
    %1290 = vst.msk [vmem:[#allocation4 + $0x20] sm:$0xf0] %vm425, %v1288
    %v1291 = vrot.slane %v1285, 4
    %1292 = vrot.lane.b32.xlu0 %v1291, 32
    %v1293 = vpop.permute.xlu0 %1292
    %v1294 = vsel %vm74, %v1293, 0
    %1296 = vmatprep.subr.mxu0 0.0
    %1297 = vmatpush1.msra.mxu0 %v204
    %1298 = vmatprep.subr.mxu0 0.0
    %1299 = vmatpush1.msra.mxu0 %v205
    %1300 = vmatprep.subr.mxu0 0.0
    %1301 = vmatpush1.msra.mxu0 %v206
    %1302 = vmatprep.subr.mxu0 0.0
    %1303 = vmatpush1.msra.mxu0 %v207
    %1304 = vmatprep.subr.mxu0 0.0
    %1305 = vmatpush1.msra.mxu0 0.0
    %1306 = vmatprep.subr.mxu0 0.0
    %1307 = vmatpush1.msra.mxu0 0.0
    %1308 = vmatprep.subr.mxu0 0.0
    %1309 = vmatpush1.msra.mxu0 0.0
    %1310 = vmatprep.subr.mxu0 0.0
    %1311 = vmatpush1.msra.mxu0 0.0
    %1312 = vmatprep.subr.mxu0 0.0
    %1313 = vmatpush1.msra.mxu0 0.0
    %1314 = vmatprep.subr.mxu0 0.0
    %1315 = vmatpush1.msra.mxu0 0.0
    %1316 = vmatprep.subr.mxu0 0.0
    %1317 = vmatpush1.msra.mxu0 0.0
    %1318 = vmatprep.subr.mxu0 0.0
    %1319 = vmatpush1.msra.mxu0 0.0
    %1320 = vmatprep.subr.mxu0 0.0
    %1321 = vmatpush1.msra.mxu0 0.0
    %1322 = vmatprep.subr.mxu0 0.0
    %1323 = vmatpush1.msra.mxu0 0.0
    %1324 = vmatprep.subr.mxu0 0.0
    %1325 = vmatpush1.msra.mxu0 0.0
    %1326 = vmatprep.subr.mxu0 0.0
    %1327 = vmatpush1.msra.mxu0 0.0
    %1328 = vmatprep.subr.mxu0 0.0
    %1329 = vmatpush1.msra.mxu0 0.0
    %1330 = vmatprep.subr.mxu0 0.0
    %1331 = vmatpush1.msra.mxu0 0.0
    %1332 = vmatprep.subr.mxu0 0.0
    %1333 = vmatpush1.msra.mxu0 0.0
    %1334 = vmatprep.subr.mxu0 0.0
    %1335 = vmatpush1.msra.mxu0 0.0
    %1336 = vmatprep.subr.mxu0 0.0
    %1337 = vmatpush1.msra.mxu0 0.0
    %1338 = vmatprep.subr.mxu0 0.0
    %1339 = vmatpush1.msra.mxu0 0.0
    %1340 = vmatprep.subr.mxu0 0.0
    %1341 = vmatpush1.msra.mxu0 0.0
    %1342 = vmatprep.subr.mxu0 0.0
    %1343 = vmatpush1.msra.mxu0 0.0
    %1344 = vmatprep.subr.mxu0 0.0
    %1345 = vmatpush1.msra.mxu0 0.0
    %1346 = vmatprep.subr.mxu0 0.0
    %1347 = vmatpush1.msra.mxu0 0.0
    %1348 = vmatprep.subr.mxu0 0.0
    %1349 = vmatpush1.msra.mxu0 0.0
    %1350 = vmatprep.subr.mxu0 0.0
    %1351 = vmatpush1.msra.mxu0 0.0
    %1352 = vmatprep.subr.mxu0 0.0
    %1353 = vmatpush1.msra.mxu0 0.0
    %1354 = vmatprep.subr.mxu0 0.0
    %1355 = vmatpush1.msra.mxu0 0.0
    %1356 = vmatprep.subr.mxu0 0.0
    %1357 = vmatpush1.msra.mxu0 0.0
    %1358 = vmatprep.subr.mxu0 0.0
    %1359 = vmatpush1.msra.mxu0 0.0
    %1360 = vmatprep.mubr.f32.mxu0 0.0
    %1361 = vmatmul.mubr.f32.gmra.mrb[0].mxu0 %v1294
    %v1362 = vpop.f32.mrb[0].mxu0
    %v1363 = vadd.f32 0.0, %v1362
    %v1364 = vpop.f32.mrb[0].mxu0
    %1365 = vdwg.mxu0
    %v1366 = vadd.f32 %v191, %v1363
    %v1367 = vxor.u32 %v1366, 2147483648
    %v1368 = vmul.f32 %v1367, 1.442695
    %v1369 = vpow.pop %v1368
    %v1370 = vadd.f32 %v1369, 1.0
    %v1371 = vrcp.pop %v1370
    %v1372 = vmul.f32 1.0, %v1371
    %v1373 = vtanh.pop %v1366
    %v1375 = vrot.slane %v1279, 4
    %v1377 = vmul.f32 %v1372, %v1375
    %1379 = vrot.lane.b32.xlu0 %v1373, 64
    %v1380 = vpop.permute.xlu0 %1379
    %v1382 = vmul.f32 %v1372, %v1380
    %1384 = vrot.lane.b32.xlu0 %v1382, 32
    %v1385 = vpop.permute.xlu0 %1384
    %v1387 = vadd.f32 %v1377, %v1385
    %v1388 = vtanh.pop %v1387
    %1390 = vrot.lane.b32.xlu0 %v1388, 64
    %v1391 = vpop.permute.xlu0 %1390
    %v1393 = vmul.f32 %v1372, %v1391
    %1395 = vrot.lane.b32.xlu0 %v1393, 32
    %v1396 = vpop.permute.xlu0 %1395
    %1398 = vst.msk [vmem:[#allocation4 + $0x28] sm:$0xf] %vm316, %v1396
    %v1399 = vsel %vm74, %v1396, 0
    %1401 = vmatprep.subr.mxu0 0.0
    %1402 = vmatpush1.msra.mxu0 %v204
    %1403 = vmatprep.subr.mxu0 0.0
    %1404 = vmatpush1.msra.mxu0 %v205
    %1405 = vmatprep.subr.mxu0 0.0
    %1406 = vmatpush1.msra.mxu0 %v206
    %1407 = vmatprep.subr.mxu0 0.0
    %1408 = vmatpush1.msra.mxu0 %v207
    %1409 = vmatprep.subr.mxu0 0.0
    %1410 = vmatpush1.msra.mxu0 0.0
    %1411 = vmatprep.subr.mxu0 0.0
    %1412 = vmatpush1.msra.mxu0 0.0
    %1413 = vmatprep.subr.mxu0 0.0
    %1414 = vmatpush1.msra.mxu0 0.0
    %1415 = vmatprep.subr.mxu0 0.0
    %1416 = vmatpush1.msra.mxu0 0.0
    %1417 = vmatprep.subr.mxu0 0.0
    %1418 = vmatpush1.msra.mxu0 0.0
    %1419 = vmatprep.subr.mxu0 0.0
    %1420 = vmatpush1.msra.mxu0 0.0
    %1421 = vmatprep.subr.mxu0 0.0
    %1422 = vmatpush1.msra.mxu0 0.0
    %1423 = vmatprep.subr.mxu0 0.0
    %1424 = vmatpush1.msra.mxu0 0.0
    %1425 = vmatprep.subr.mxu0 0.0
    %1426 = vmatpush1.msra.mxu0 0.0
    %1427 = vmatprep.subr.mxu0 0.0
    %1428 = vmatpush1.msra.mxu0 0.0
    %1429 = vmatprep.subr.mxu0 0.0
    %1430 = vmatpush1.msra.mxu0 0.0
    %1431 = vmatprep.subr.mxu0 0.0
    %1432 = vmatpush1.msra.mxu0 0.0
    %1433 = vmatprep.subr.mxu0 0.0
    %1434 = vmatpush1.msra.mxu0 0.0
    %1435 = vmatprep.subr.mxu0 0.0
    %1436 = vmatpush1.msra.mxu0 0.0
    %1437 = vmatprep.subr.mxu0 0.0
    %1438 = vmatpush1.msra.mxu0 0.0
    %1439 = vmatprep.subr.mxu0 0.0
    %1440 = vmatpush1.msra.mxu0 0.0
    %1441 = vmatprep.subr.mxu0 0.0
    %1442 = vmatpush1.msra.mxu0 0.0
    %1443 = vmatprep.subr.mxu0 0.0
    %1444 = vmatpush1.msra.mxu0 0.0
    %1445 = vmatprep.subr.mxu0 0.0
    %1446 = vmatpush1.msra.mxu0 0.0
    %1447 = vmatprep.subr.mxu0 0.0
    %1448 = vmatpush1.msra.mxu0 0.0
    %1449 = vmatprep.subr.mxu0 0.0
    %1450 = vmatpush1.msra.mxu0 0.0
    %1451 = vmatprep.subr.mxu0 0.0
    %1452 = vmatpush1.msra.mxu0 0.0
    %1453 = vmatprep.subr.mxu0 0.0
    %1454 = vmatpush1.msra.mxu0 0.0
    %1455 = vmatprep.subr.mxu0 0.0
    %1456 = vmatpush1.msra.mxu0 0.0
    %1457 = vmatprep.subr.mxu0 0.0
    %1458 = vmatpush1.msra.mxu0 0.0
    %1459 = vmatprep.subr.mxu0 0.0
    %1460 = vmatpush1.msra.mxu0 0.0
    %1461 = vmatprep.subr.mxu0 0.0
    %1462 = vmatpush1.msra.mxu0 0.0
    %1463 = vmatprep.subr.mxu0 0.0
    %1464 = vmatpush1.msra.mxu0 0.0
    %1465 = vmatprep.mubr.f32.mxu0 0.0
    %1466 = vmatmul.mubr.f32.gmra.mrb[0].mxu0 %v1399
    %v1467 = vpop.f32.mrb[0].mxu0
    %v1468 = vadd.f32 0.0, %v1467
    %v1469 = vpop.f32.mrb[0].mxu0
    %1470 = vdwg.mxu0
    %v1472 = vrot.slane %v1468, 4
    %v1474 = vadd.f32 %v191, %v1472
    %v1475 = vxor.u32 %v1474, 2147483648
    %v1476 = vmul.f32 %v1475, 1.442695
    %v1477 = vpow.pop %v1476
    %v1478 = vadd.f32 %v1477, 1.0
    %v1479 = vrcp.pop %v1478
    %v1480 = vmul.f32 1.0, %v1479
    %v1481 = vtanh.pop %v1474
    %v1483 = vrot.slane %v1387, 4
    %v1485 = vmul.f32 %v1480, %v1483
    %1487 = vrot.lane.b32.xlu0 %v1481, 64
    %v1488 = vpop.permute.xlu0 %1487
    %v1490 = vmul.f32 %v1480, %v1488
    %1492 = vrot.lane.b32.xlu0 %v1490, 32
    %v1493 = vpop.permute.xlu0 %1492
    %v1495 = vadd.f32 %v1485, %v1493
    %v1496 = vtanh.pop %v1495
    %1498 = vrot.lane.b32.xlu0 %v1496, 64
    %v1499 = vpop.permute.xlu0 %1498
    %v1501 = vmul.f32 %v1480, %v1499
    %1503 = vrot.lane.b32.xlu0 %v1501, 32
    %v1504 = vpop.permute.xlu0 %1503
    %1506 = vst.msk [vmem:[#allocation4 + $0x28] sm:$0xf0] %vm425, %v1504
    %v1507 = vrot.slane %v1501, 4
    %1508 = vrot.lane.b32.xlu0 %v1507, 32
    %v1509 = vpop.permute.xlu0 %1508
    %v1510 = vsel %vm74, %v1509, 0
    %1512 = vmatprep.subr.mxu0 0.0
    %1513 = vmatpush1.msra.mxu0 %v204
    %1514 = vmatprep.subr.mxu0 0.0
    %1515 = vmatpush1.msra.mxu0 %v205
    %1516 = vmatprep.subr.mxu0 0.0
    %1517 = vmatpush1.msra.mxu0 %v206
    %1518 = vmatprep.subr.mxu0 0.0
    %1519 = vmatpush1.msra.mxu0 %v207
    %1520 = vmatprep.subr.mxu0 0.0
    %1521 = vmatpush1.msra.mxu0 0.0
    %1522 = vmatprep.subr.mxu0 0.0
    %1523 = vmatpush1.msra.mxu0 0.0
    %1524 = vmatprep.subr.mxu0 0.0
    %1525 = vmatpush1.msra.mxu0 0.0
    %1526 = vmatprep.subr.mxu0 0.0
    %1527 = vmatpush1.msra.mxu0 0.0
    %1528 = vmatprep.subr.mxu0 0.0
    %1529 = vmatpush1.msra.mxu0 0.0
    %1530 = vmatprep.subr.mxu0 0.0
    %1531 = vmatpush1.msra.mxu0 0.0
    %1532 = vmatprep.subr.mxu0 0.0
    %1533 = vmatpush1.msra.mxu0 0.0
    %1534 = vmatprep.subr.mxu0 0.0
    %1535 = vmatpush1.msra.mxu0 0.0
    %1536 = vmatprep.subr.mxu0 0.0
    %1537 = vmatpush1.msra.mxu0 0.0
    %1538 = vmatprep.subr.mxu0 0.0
    %1539 = vmatpush1.msra.mxu0 0.0
    %1540 = vmatprep.subr.mxu0 0.0
    %1541 = vmatpush1.msra.mxu0 0.0
    %1542 = vmatprep.subr.mxu0 0.0
    %1543 = vmatpush1.msra.mxu0 0.0
    %1544 = vmatprep.subr.mxu0 0.0
    %1545 = vmatpush1.msra.mxu0 0.0
    %1546 = vmatprep.subr.mxu0 0.0
    %1547 = vmatpush1.msra.mxu0 0.0
    %1548 = vmatprep.subr.mxu0 0.0
    %1549 = vmatpush1.msra.mxu0 0.0
    %1550 = vmatprep.subr.mxu0 0.0
    %1551 = vmatpush1.msra.mxu0 0.0
    %1552 = vmatprep.subr.mxu0 0.0
    %1553 = vmatpush1.msra.mxu0 0.0
    %1554 = vmatprep.subr.mxu0 0.0
    %1555 = vmatpush1.msra.mxu0 0.0
    %1556 = vmatprep.subr.mxu0 0.0
    %1557 = vmatpush1.msra.mxu0 0.0
    %1558 = vmatprep.subr.mxu0 0.0
    %1559 = vmatpush1.msra.mxu0 0.0
    %1560 = vmatprep.subr.mxu0 0.0
    %1561 = vmatpush1.msra.mxu0 0.0
    %1562 = vmatprep.subr.mxu0 0.0
    %1563 = vmatpush1.msra.mxu0 0.0
    %1564 = vmatprep.subr.mxu0 0.0
    %1565 = vmatpush1.msra.mxu0 0.0
    %1566 = vmatprep.subr.mxu0 0.0
    %1567 = vmatpush1.msra.mxu0 0.0
    %1568 = vmatprep.subr.mxu0 0.0
    %1569 = vmatpush1.msra.mxu0 0.0
    %1570 = vmatprep.subr.mxu0 0.0
    %1571 = vmatpush1.msra.mxu0 0.0
    %1572 = vmatprep.subr.mxu0 0.0
    %1573 = vmatpush1.msra.mxu0 0.0
    %1574 = vmatprep.subr.mxu0 0.0
    %1575 = vmatpush1.msra.mxu0 0.0
    %1576 = vmatprep.mubr.f32.mxu0 0.0
    %1577 = vmatmul.mubr.f32.gmra.mrb[0].mxu0 %v1510
    %v1578 = vpop.f32.mrb[0].mxu0
    %v1579 = vadd.f32 0.0, %v1578
    %v1580 = vpop.f32.mrb[0].mxu0
    %1581 = vdwg.mxu0
    %v1582 = vadd.f32 %v196, %v1579
    %v1583 = vxor.u32 %v1582, 2147483648
    %v1584 = vmul.f32 %v1583, 1.442695
    %v1585 = vpow.pop %v1584
    %v1586 = vadd.f32 %v1585, 1.0
    %v1587 = vrcp.pop %v1586
    %v1588 = vmul.f32 1.0, %v1587
    %v1589 = vtanh.pop %v1582
    %v1591 = vrot.slane %v1495, 4
    %v1593 = vmul.f32 %v1588, %v1591
    %1595 = vrot.lane.b32.xlu0 %v1589, 64
    %v1596 = vpop.permute.xlu0 %1595
    %v1598 = vmul.f32 %v1588, %v1596
    %1600 = vrot.lane.b32.xlu0 %v1598, 32
    %v1601 = vpop.permute.xlu0 %1600
    %v1603 = vadd.f32 %v1593, %v1601
    %v1604 = vtanh.pop %v1603
    %1606 = vrot.lane.b32.xlu0 %v1604, 64
    %v1607 = vpop.permute.xlu0 %1606
    %v1609 = vmul.f32 %v1588, %v1607
    %1611 = vrot.lane.b32.xlu0 %v1609, 32
    %v1612 = vpop.permute.xlu0 %1611
    %1614 = vst.msk [vmem:[#allocation4 + $0x30] sm:$0xf] %vm316, %v1612
    %v1615 = vsel %vm74, %v1612, 0
    %1617 = vmatprep.subr.mxu0 0.0
    %1618 = vmatpush1.msra.mxu0 %v204
    %1619 = vmatprep.subr.mxu0 0.0
    %1620 = vmatpush1.msra.mxu0 %v205
    %1621 = vmatprep.subr.mxu0 0.0
    %1622 = vmatpush1.msra.mxu0 %v206
    %1623 = vmatprep.subr.mxu0 0.0
    %1624 = vmatpush1.msra.mxu0 %v207
    %1625 = vmatprep.subr.mxu0 0.0
    %1626 = vmatpush1.msra.mxu0 0.0
    %1627 = vmatprep.subr.mxu0 0.0
    %1628 = vmatpush1.msra.mxu0 0.0
    %1629 = vmatprep.subr.mxu0 0.0
    %1630 = vmatpush1.msra.mxu0 0.0
    %1631 = vmatprep.subr.mxu0 0.0
    %1632 = vmatpush1.msra.mxu0 0.0
    %1633 = vmatprep.subr.mxu0 0.0
    %1634 = vmatpush1.msra.mxu0 0.0
    %1635 = vmatprep.subr.mxu0 0.0
    %1636 = vmatpush1.msra.mxu0 0.0
    %1637 = vmatprep.subr.mxu0 0.0
    %1638 = vmatpush1.msra.mxu0 0.0
    %1639 = vmatprep.subr.mxu0 0.0
    %1640 = vmatpush1.msra.mxu0 0.0
    %1641 = vmatprep.subr.mxu0 0.0
    %1642 = vmatpush1.msra.mxu0 0.0
    %1643 = vmatprep.subr.mxu0 0.0
    %1644 = vmatpush1.msra.mxu0 0.0
    %1645 = vmatprep.subr.mxu0 0.0
    %1646 = vmatpush1.msra.mxu0 0.0
    %1647 = vmatprep.subr.mxu0 0.0
    %1648 = vmatpush1.msra.mxu0 0.0
    %1649 = vmatprep.subr.mxu0 0.0
    %1650 = vmatpush1.msra.mxu0 0.0
    %1651 = vmatprep.subr.mxu0 0.0
    %1652 = vmatpush1.msra.mxu0 0.0
    %1653 = vmatprep.subr.mxu0 0.0
    %1654 = vmatpush1.msra.mxu0 0.0
    %1655 = vmatprep.subr.mxu0 0.0
    %1656 = vmatpush1.msra.mxu0 0.0
    %1657 = vmatprep.subr.mxu0 0.0
    %1658 = vmatpush1.msra.mxu0 0.0
    %1659 = vmatprep.subr.mxu0 0.0
    %1660 = vmatpush1.msra.mxu0 0.0
    %1661 = vmatprep.subr.mxu0 0.0
    %1662 = vmatpush1.msra.mxu0 0.0
    %1663 = vmatprep.subr.mxu0 0.0
    %1664 = vmatpush1.msra.mxu0 0.0
    %1665 = vmatprep.subr.mxu0 0.0
    %1666 = vmatpush1.msra.mxu0 0.0
    %1667 = vmatprep.subr.mxu0 0.0
    %1668 = vmatpush1.msra.mxu0 0.0
    %1669 = vmatprep.subr.mxu0 0.0
    %1670 = vmatpush1.msra.mxu0 0.0
    %1671 = vmatprep.subr.mxu0 0.0
    %1672 = vmatpush1.msra.mxu0 0.0
    %1673 = vmatprep.subr.mxu0 0.0
    %1674 = vmatpush1.msra.mxu0 0.0
    %1675 = vmatprep.subr.mxu0 0.0
    %1676 = vmatpush1.msra.mxu0 0.0
    %1677 = vmatprep.subr.mxu0 0.0
    %1678 = vmatpush1.msra.mxu0 0.0
    %1679 = vmatprep.subr.mxu0 0.0
    %1680 = vmatpush1.msra.mxu0 0.0
    %1681 = vmatprep.mubr.f32.mxu0 0.0
    %1682 = vmatmul.mubr.f32.gmra.mrb[0].mxu0 %v1615
    %v1683 = vpop.f32.mrb[0].mxu0
    %v1684 = vadd.f32 0.0, %v1683
    %v1685 = vpop.f32.mrb[0].mxu0
    %1686 = vdwg.mxu0
    %v1688 = vrot.slane %v1684, 4
    %v1690 = vadd.f32 %v196, %v1688
    %v1691 = vxor.u32 %v1690, 2147483648
    %v1692 = vmul.f32 %v1691, 1.442695
    %v1693 = vpow.pop %v1692
    %v1694 = vadd.f32 %v1693, 1.0
    %v1695 = vrcp.pop %v1694
    %v1696 = vmul.f32 1.0, %v1695
    %v1697 = vtanh.pop %v1690
    %v1699 = vrot.slane %v1603, 4
    %v1701 = vmul.f32 %v1696, %v1699
    %1703 = vrot.lane.b32.xlu0 %v1697, 64
    %v1704 = vpop.permute.xlu0 %1703
    %v1706 = vmul.f32 %v1696, %v1704
    %1708 = vrot.lane.b32.xlu0 %v1706, 32
    %v1709 = vpop.permute.xlu0 %1708
    %v1711 = vadd.f32 %v1701, %v1709
    %v1712 = vtanh.pop %v1711
    %1714 = vrot.lane.b32.xlu0 %v1712, 64
    %v1715 = vpop.permute.xlu0 %1714
    %v1717 = vmul.f32 %v1696, %v1715
    %1719 = vrot.lane.b32.xlu0 %v1717, 32
    %v1720 = vpop.permute.xlu0 %1719
    %1722 = vst.msk [vmem:[#allocation4 + $0x30] sm:$0xf0] %vm425, %v1720
    %v1723 = vrot.slane %v1717, 4
    %1724 = vrot.lane.b32.xlu0 %v1723, 32
    %v1725 = vpop.permute.xlu0 %1724
    %v1726 = vsel %vm74, %v1725, 0
    %1728 = vmatprep.subr.mxu0 0.0
    %1729 = vmatpush1.msra.mxu0 %v204
    %1730 = vmatprep.subr.mxu0 0.0
    %1731 = vmatpush1.msra.mxu0 %v205
    %1732 = vmatprep.subr.mxu0 0.0
    %1733 = vmatpush1.msra.mxu0 %v206
    %1734 = vmatprep.subr.mxu0 0.0
    %1735 = vmatpush1.msra.mxu0 %v207
    %1736 = vmatprep.subr.mxu0 0.0
    %1737 = vmatpush1.msra.mxu0 0.0
    %1738 = vmatprep.subr.mxu0 0.0
    %1739 = vmatpush1.msra.mxu0 0.0
    %1740 = vmatprep.subr.mxu0 0.0
    %1741 = vmatpush1.msra.mxu0 0.0
    %1742 = vmatprep.subr.mxu0 0.0
    %1743 = vmatpush1.msra.mxu0 0.0
    %1744 = vmatprep.subr.mxu0 0.0
    %1745 = vmatpush1.msra.mxu0 0.0
    %1746 = vmatprep.subr.mxu0 0.0
    %1747 = vmatpush1.msra.mxu0 0.0
    %1748 = vmatprep.subr.mxu0 0.0
    %1749 = vmatpush1.msra.mxu0 0.0
    %1750 = vmatprep.subr.mxu0 0.0
    %1751 = vmatpush1.msra.mxu0 0.0
    %1752 = vmatprep.subr.mxu0 0.0
    %1753 = vmatpush1.msra.mxu0 0.0
    %1754 = vmatprep.subr.mxu0 0.0
    %1755 = vmatpush1.msra.mxu0 0.0
    %1756 = vmatprep.subr.mxu0 0.0
    %1757 = vmatpush1.msra.mxu0 0.0
    %1758 = vmatprep.subr.mxu0 0.0
    %1759 = vmatpush1.msra.mxu0 0.0
    %1760 = vmatprep.subr.mxu0 0.0
    %1761 = vmatpush1.msra.mxu0 0.0
    %1762 = vmatprep.subr.mxu0 0.0
    %1763 = vmatpush1.msra.mxu0 0.0
    %1764 = vmatprep.subr.mxu0 0.0
    %1765 = vmatpush1.msra.mxu0 0.0
    %1766 = vmatprep.subr.mxu0 0.0
    %1767 = vmatpush1.msra.mxu0 0.0
    %1768 = vmatprep.subr.mxu0 0.0
    %1769 = vmatpush1.msra.mxu0 0.0
    %1770 = vmatprep.subr.mxu0 0.0
    %1771 = vmatpush1.msra.mxu0 0.0
    %1772 = vmatprep.subr.mxu0 0.0
    %1773 = vmatpush1.msra.mxu0 0.0
    %1774 = vmatprep.subr.mxu0 0.0
    %1775 = vmatpush1.msra.mxu0 0.0
    %1776 = vmatprep.subr.mxu0 0.0
    %1777 = vmatpush1.msra.mxu0 0.0
    %1778 = vmatprep.subr.mxu0 0.0
    %1779 = vmatpush1.msra.mxu0 0.0
    %1780 = vmatprep.subr.mxu0 0.0
    %1781 = vmatpush1.msra.mxu0 0.0
    %1782 = vmatprep.subr.mxu0 0.0
    %1783 = vmatpush1.msra.mxu0 0.0
    %1784 = vmatprep.subr.mxu0 0.0
    %1785 = vmatpush1.msra.mxu0 0.0
    %1786 = vmatprep.subr.mxu0 0.0
    %1787 = vmatpush1.msra.mxu0 0.0
    %1788 = vmatprep.subr.mxu0 0.0
    %1789 = vmatpush1.msra.mxu0 0.0
    %1790 = vmatprep.subr.mxu0 0.0
    %1791 = vmatpush1.msra.mxu0 0.0
    %1792 = vmatprep.mubr.f32.mxu0 0.0
    %1793 = vmatmul.mubr.f32.gmra.mrb[0].mxu0 %v1726
    %v1794 = vpop.f32.mrb[0].mxu0
    %v1795 = vadd.f32 0.0, %v1794
    %v1796 = vpop.f32.mrb[0].mxu0
    %1797 = vdwg.mxu0
    %v1798 = vadd.f32 %v201, %v1795
    %v1799 = vxor.u32 %v1798, 2147483648
    %v1800 = vmul.f32 %v1799, 1.442695
    %v1801 = vpow.pop %v1800
    %v1802 = vadd.f32 %v1801, 1.0
    %v1803 = vrcp.pop %v1802
    %v1804 = vmul.f32 1.0, %v1803
    %v1805 = vtanh.pop %v1798
    %v1807 = vrot.slane %v1711, 4
    %v1809 = vmul.f32 %v1804, %v1807
    %1811 = vrot.lane.b32.xlu0 %v1805, 64
    %v1812 = vpop.permute.xlu0 %1811
    %v1814 = vmul.f32 %v1804, %v1812
    %1816 = vrot.lane.b32.xlu0 %v1814, 32
    %v1817 = vpop.permute.xlu0 %1816
    %v1819 = vadd.f32 %v1809, %v1817
    %v1820 = vtanh.pop %v1819
    %1822 = vrot.lane.b32.xlu0 %v1820, 64
    %v1823 = vpop.permute.xlu0 %1822
    %v1825 = vmul.f32 %v1804, %v1823
    %1827 = vrot.lane.b32.xlu0 %v1825, 32
    %v1828 = vpop.permute.xlu0 %1827
    %1830 = vst.msk [vmem:[#allocation4 + $0x38] sm:$0xf] %vm316, %v1828
    %v1831 = vsel %vm74, %v1828, 0
    %1833 = vmatprep.subr.mxu0 0.0
    %1834 = vmatpush1.msra.mxu0 %v204
    %1835 = vmatprep.subr.mxu0 0.0
    %1836 = vmatpush1.msra.mxu0 %v205
    %1837 = vmatprep.subr.mxu0 0.0
    %1838 = vmatpush1.msra.mxu0 %v206
    %1839 = vmatprep.subr.mxu0 0.0
    %1840 = vmatpush1.msra.mxu0 %v207
    %1841 = vmatprep.subr.mxu0 0.0
    %1842 = vmatpush1.msra.mxu0 0.0
    %1843 = vmatprep.subr.mxu0 0.0
    %1844 = vmatpush1.msra.mxu0 0.0
    %1845 = vmatprep.subr.mxu0 0.0
    %1846 = vmatpush1.msra.mxu0 0.0
    %1847 = vmatprep.subr.mxu0 0.0
    %1848 = vmatpush1.msra.mxu0 0.0
    %1849 = vmatprep.subr.mxu0 0.0
    %1850 = vmatpush1.msra.mxu0 0.0
    %1851 = vmatprep.subr.mxu0 0.0
    %1852 = vmatpush1.msra.mxu0 0.0
    %1853 = vmatprep.subr.mxu0 0.0
    %1854 = vmatpush1.msra.mxu0 0.0
    %1855 = vmatprep.subr.mxu0 0.0
    %1856 = vmatpush1.msra.mxu0 0.0
    %1857 = vmatprep.subr.mxu0 0.0
    %1858 = vmatpush1.msra.mxu0 0.0
    %1859 = vmatprep.subr.mxu0 0.0
    %1860 = vmatpush1.msra.mxu0 0.0
    %1861 = vmatprep.subr.mxu0 0.0
    %1862 = vmatpush1.msra.mxu0 0.0
    %1863 = vmatprep.subr.mxu0 0.0
    %1864 = vmatpush1.msra.mxu0 0.0
    %1865 = vmatprep.subr.mxu0 0.0
    %1866 = vmatpush1.msra.mxu0 0.0
    %1867 = vmatprep.subr.mxu0 0.0
    %1868 = vmatpush1.msra.mxu0 0.0
    %1869 = vmatprep.subr.mxu0 0.0
    %1870 = vmatpush1.msra.mxu0 0.0
    %1871 = vmatprep.subr.mxu0 0.0
    %1872 = vmatpush1.msra.mxu0 0.0
    %1873 = vmatprep.subr.mxu0 0.0
    %1874 = vmatpush1.msra.mxu0 0.0
    %1875 = vmatprep.subr.mxu0 0.0
    %1876 = vmatpush1.msra.mxu0 0.0
    %1877 = vmatprep.subr.mxu0 0.0
    %1878 = vmatpush1.msra.mxu0 0.0
    %1879 = vmatprep.subr.mxu0 0.0
    %1880 = vmatpush1.msra.mxu0 0.0
    %1881 = vmatprep.subr.mxu0 0.0
    %1882 = vmatpush1.msra.mxu0 0.0
    %1883 = vmatprep.subr.mxu0 0.0
    %1884 = vmatpush1.msra.mxu0 0.0
    %1885 = vmatprep.subr.mxu0 0.0
    %1886 = vmatpush1.msra.mxu0 0.0
    %1887 = vmatprep.subr.mxu0 0.0
    %1888 = vmatpush1.msra.mxu0 0.0
    %1889 = vmatprep.subr.mxu0 0.0
    %1890 = vmatpush1.msra.mxu0 0.0
    %1891 = vmatprep.subr.mxu0 0.0
    %1892 = vmatpush1.msra.mxu0 0.0
    %1893 = vmatprep.subr.mxu0 0.0
    %1894 = vmatpush1.msra.mxu0 0.0
    %1895 = vmatprep.subr.mxu0 0.0
    %1896 = vmatpush1.msra.mxu0 0.0
    %1897 = vmatprep.mubr.f32.mxu0 0.0
    %1898 = vmatmul.mubr.f32.gmra.mrb[0].mxu0 %v1831
    %v1899 = vpop.f32.mrb[0].mxu0
    %v1900 = vadd.f32 0.0, %v1899
    %v1901 = vpop.f32.mrb[0].mxu0
    %1902 = vdwg.mxu0
    %v1904 = vrot.slane %v1900, 4
    %v1906 = vadd.f32 %v201, %v1904
    %v1907 = vxor.u32 %v1906, 2147483648
    %v1908 = vmul.f32 %v1907, 1.442695
    %v1909 = vpow.pop %v1908
    %v1910 = vadd.f32 %v1909, 1.0
    %v1911 = vrcp.pop %v1910
    %v1912 = vmul.f32 1.0, %v1911
    %v1913 = vtanh.pop %v1906
    %v1915 = vrot.slane %v1819, 4
    %v1917 = vmul.f32 %v1912, %v1915
    %1919 = vrot.lane.b32.xlu0 %v1913, 64
    %v1920 = vpop.permute.xlu0 %1919
    %v1922 = vmul.f32 %v1912, %v1920
    %1924 = vrot.lane.b32.xlu0 %v1922, 32
    %v1925 = vpop.permute.xlu0 %1924
    %v1927 = vadd.f32 %v1917, %v1925
    %v1928 = vtanh.pop %v1927
    %1930 = vrot.lane.b32.xlu0 %v1928, 64
    %v1931 = vpop.permute.xlu0 %1930
    %v1933 = vmul.f32 %v1912, %v1931
    %1935 = vrot.lane.b32.xlu0 %v1933, 32
    %v1936 = vpop.permute.xlu0 %1935
    %1938 = vst.msk [vmem:[#allocation4 + $0x38] sm:$0xf0] %vm425, %v1936
    %1939 = vst.msk [vmem:[#allocation2 - $0x4] sm:$0xf0] %vm425, %v1936
    %1941 = vrot.lane.b32.xlu0 %v1927, 96
    %v1942 = vpop.permute.xlu0 %1941
    %1944 = vst.msk [vmem:[#allocation3 - $0x4] sm:$0xf0] %vm425, %v1942
    %1945 = vst.msk [vmem:[#allocation9 - $0x4] sm:$0xf0] %vm425, %v1942
    %v1946 = vld [vmem:[#allocation4] sm:$0xff]
    %v1947 = vld [vmem:[#allocation4 + $0x8] sm:$0xff]
    %v1948 = vld [vmem:[#allocation4 + $0x10] sm:$0xff]
    %v1949 = vld [vmem:[#allocation4 + $0x18] sm:$0xff]
    %v1950 = vld [vmem:[#allocation4 + $0x20] sm:$0xff]
    %v1951 = vld [vmem:[#allocation4 + $0x28] sm:$0xff]
    %v1952 = vld [vmem:[#allocation4 + $0x30] sm:$0xff]
    %v1953 = vld [vmem:[#allocation4 + $0x38] sm:$0xff]
    %1954 = vst.msk [vmem:[%s9] sm:$0xff] %vm74, %v1946
    %1955 = vst.msk [vmem:[%s9 + $0x8] sm:$0xff] %vm74, %v1947
    %1956 = vst.msk [vmem:[%s9 + $0x10] sm:$0xff] %vm74, %v1948
    %1957 = vst.msk [vmem:[%s9 + $0x18] sm:$0xff] %vm74, %v1949
    %1958 = vst.msk [vmem:[%s9 + $0x20] sm:$0xff] %vm74, %v1950
    %1959 = vst.msk [vmem:[%s9 + $0x28] sm:$0xff] %vm74, %v1951
    %1960 = vst.msk [vmem:[%s9 + $0x30] sm:$0xff] %vm74, %v1952
    %1961 = vst.msk [vmem:[%s9 + $0x38] sm:$0xff] %vm74, %v1953
    %v1962 = vld [vmem:[%s6] sm:$0xff]
    %v1963 = vld [vmem:[%s6 + $0x8] sm:$0xff]
    %v1964 = vld [vmem:[%s6 + $0x10] sm:$0xff]
    %v1965 = vld [vmem:[%s6 + $0x18] sm:$0xff]
    %v1966 = vld [vmem:[%s7] sm:$0x1]
    %v1968 = vlaneseq
    %v1969 = vshrl.u32 %v1968, 7
    %v1970 = vsub.s32 0, %v1969
    %v1971 = vrot.slane %v1966, %v1970
    %v1974 = vsel %vm74, %v1946, 0
    %v1977 = vsel %vm74, %v1947, 0
    %v1980 = vsel %vm74, %v1948, 0
    %v1983 = vsel %vm74, %v1949, 0
    %v1986 = vsel %vm74, %v1950, 0
    %v1989 = vsel %vm74, %v1951, 0
    %v1992 = vsel %vm74, %v1952, 0
    %v1995 = vsel %vm74, %v1953, 0
    %1997 = vmatprep.subr.mxu0 0.0
    %1998 = vmatpush1.msra.mxu0 %v1962
    %1999 = vmatprep.subr.mxu0 0.0
    %2000 = vmatpush1.msra.mxu0 %v1963
    %2001 = vmatprep.subr.mxu0 0.0
    %2002 = vmatpush1.msra.mxu0 %v1964
    %2003 = vmatprep.subr.mxu0 0.0
    %2004 = vmatpush1.msra.mxu0 %v1965
    %2005 = vmatprep.subr.mxu0 0.0
    %2006 = vmatpush1.msra.mxu0 0.0
    %2007 = vmatprep.subr.mxu0 0.0
    %2008 = vmatpush1.msra.mxu0 0.0
    %2009 = vmatprep.subr.mxu0 0.0
    %2010 = vmatpush1.msra.mxu0 0.0
    %2011 = vmatprep.subr.mxu0 0.0
    %2012 = vmatpush1.msra.mxu0 0.0
    %2013 = vmatprep.subr.mxu0 0.0
    %2014 = vmatpush1.msra.mxu0 0.0
    %2015 = vmatprep.subr.mxu0 0.0
    %2016 = vmatpush1.msra.mxu0 0.0
    %2017 = vmatprep.subr.mxu0 0.0
    %2018 = vmatpush1.msra.mxu0 0.0
    %2019 = vmatprep.subr.mxu0 0.0
    %2020 = vmatpush1.msra.mxu0 0.0
    %2021 = vmatprep.subr.mxu0 0.0
    %2022 = vmatpush1.msra.mxu0 0.0
    %2023 = vmatprep.subr.mxu0 0.0
    %2024 = vmatpush1.msra.mxu0 0.0
    %2025 = vmatprep.subr.mxu0 0.0
    %2026 = vmatpush1.msra.mxu0 0.0
    %2027 = vmatprep.subr.mxu0 0.0
    %2028 = vmatpush1.msra.mxu0 0.0
    %2029 = vmatprep.subr.mxu0 0.0
    %2030 = vmatpush1.msra.mxu0 0.0
    %2031 = vmatprep.subr.mxu0 0.0
    %2032 = vmatpush1.msra.mxu0 0.0
    %2033 = vmatprep.subr.mxu0 0.0
    %2034 = vmatpush1.msra.mxu0 0.0
    %2035 = vmatprep.subr.mxu0 0.0
    %2036 = vmatpush1.msra.mxu0 0.0
    %2037 = vmatprep.subr.mxu0 0.0
    %2038 = vmatpush1.msra.mxu0 0.0
    %2039 = vmatprep.subr.mxu0 0.0
    %2040 = vmatpush1.msra.mxu0 0.0
    %2041 = vmatprep.subr.mxu0 0.0
    %2042 = vmatpush1.msra.mxu0 0.0
    %2043 = vmatprep.subr.mxu0 0.0
    %2044 = vmatpush1.msra.mxu0 0.0
    %2045 = vmatprep.subr.mxu0 0.0
    %2046 = vmatpush1.msra.mxu0 0.0
    %2047 = vmatprep.subr.mxu0 0.0
    %2048 = vmatpush1.msra.mxu0 0.0
    %2049 = vmatprep.subr.mxu0 0.0
    %2050 = vmatpush1.msra.mxu0 0.0
    %2051 = vmatprep.subr.mxu0 0.0
    %2052 = vmatpush1.msra.mxu0 0.0
    %2053 = vmatprep.subr.mxu0 0.0
    %2054 = vmatpush1.msra.mxu0 0.0
    %2055 = vmatprep.subr.mxu0 0.0
    %2056 = vmatpush1.msra.mxu0 0.0
    %2057 = vmatprep.subr.mxu0 0.0
    %2058 = vmatpush1.msra.mxu0 0.0
    %2059 = vmatprep.subr.mxu0 0.0
    %2060 = vmatpush1.msra.mxu0 0.0
    %2061 = vmatprep.mubr.f32.mxu0 0.0
    %2062 = vmatmul.mubr.f32.gmra.mrb[0].mxu0 %v1974
    %v2063 = vpop.f32.mrb[0].mxu0
    %v2064 = vadd.f32 %v1971, %v2063
    %v2065 = vpop.f32.mrb[0].mxu0
    %2066 = vmatprep.mubr.f32.mxu0 0.0
    %2067 = vmatmul.mubr.f32.gmra.mrb[0].mxu0 %v1977
    %v2068 = vpop.f32.mrb[0].mxu0
    %v2069 = vadd.f32 %v1971, %v2068
    %v2070 = vpop.f32.mrb[0].mxu0
    %2071 = vmatprep.mubr.f32.mxu0 0.0
    %2072 = vmatmul.mubr.f32.gmra.mrb[0].mxu0 %v1980
    %v2073 = vpop.f32.mrb[0].mxu0
    %v2074 = vadd.f32 %v1971, %v2073
    %v2075 = vpop.f32.mrb[0].mxu0
    %2076 = vmatprep.mubr.f32.mxu0 0.0
    %2077 = vmatmul.mubr.f32.gmra.mrb[0].mxu0 %v1983
    %v2078 = vpop.f32.mrb[0].mxu0
    %v2079 = vadd.f32 %v1971, %v2078
    %v2080 = vpop.f32.mrb[0].mxu0
    %2081 = vmatprep.mubr.f32.mxu0 0.0
    %2082 = vmatmul.mubr.f32.gmra.mrb[0].mxu0 %v1986
    %v2083 = vpop.f32.mrb[0].mxu0
    %v2084 = vadd.f32 %v1971, %v2083
    %v2085 = vpop.f32.mrb[0].mxu0
    %2086 = vmatprep.mubr.f32.mxu0 0.0
    %2087 = vmatmul.mubr.f32.gmra.mrb[0].mxu0 %v1989
    %v2088 = vpop.f32.mrb[0].mxu0
    %v2089 = vadd.f32 %v1971, %v2088
    %v2090 = vpop.f32.mrb[0].mxu0
    %2091 = vmatprep.mubr.f32.mxu0 0.0
    %2092 = vmatmul.mubr.f32.gmra.mrb[0].mxu0 %v1992
    %v2093 = vpop.f32.mrb[0].mxu0
    %v2094 = vadd.f32 %v1971, %v2093
    %v2095 = vpop.f32.mrb[0].mxu0
    %2096 = vmatprep.mubr.f32.mxu0 0.0
    %2097 = vmatmul.mubr.f32.gmra.mrb[0].mxu0 %v1995
    %v2098 = vpop.f32.mrb[0].mxu0
    %v2099 = vadd.f32 %v1971, %v2098
    %v2100 = vpop.f32.mrb[0].mxu0
    %2101 = vdwg.mxu0
    %2102 = vst [vmem:[#allocation8] sm:$0xff] %v2064
    %2103 = vst [vmem:[#allocation8 + $0x8] sm:$0xff] %v2069
    %2104 = vst [vmem:[#allocation8 + $0x10] sm:$0xff] %v2074
    %2105 = vst [vmem:[#allocation8 + $0x18] sm:$0xff] %v2079
    %2106 = vst [vmem:[#allocation8 + $0x20] sm:$0xff] %v2084
    %2107 = vst [vmem:[#allocation8 + $0x28] sm:$0xff] %v2089
    %2108 = vst [vmem:[#allocation8 + $0x30] sm:$0xff] %v2094
    %2109 = vst [vmem:[#allocation8 + $0x38] sm:$0xff] %v2099
    // Predicated region
    $region42: #{tpu_custom_call.1} parent=1 // pred_check
      _
    $region43: #{tpu_custom_call.1} parent=1 // pred_check_branch
      %2111 = sbr.rel (0) target = $region45
    $region44: #{tpu_custom_call.1} parent=1 // pred_region
      %s2113 = ssub.s32 1024, 1024
      %2114 = vsyncadd [#allocation7], %s2113
      %s2115 = sshll.u32 [#allocation8], 4
      %s2116 = int_to_ptr.vmem [resolvable:$true] %s2115
      %2121 = dma.vmem_to_hbm [thread:$0]  %s2116, 1024, %s8, [#allocation7], 128, 128, 8
    $region45: #{tpu_custom_call.1} parent=1 // pred_fallthru
      _
    // Predicated region
    $region46: #{tpu_custom_call.1} parent=1 // pred_check
      _
    $region47: #{tpu_custom_call.1} parent=1 // pred_check_branch
      %2123 = sbr.rel (0) target = $region49
    $region48: #{tpu_custom_call.1} parent=1 // pred_region
      _
    $region49: #{tpu_custom_call.1} parent=1 // pred_fallthru
      _
    // Predicated region
    $region50: #{tpu_custom_call.1} parent=1 // pred_check
      _
    $region51: #{tpu_custom_call.1} parent=1 // pred_check_branch
      %2125 = sbr.rel (0) target = $region53
    $region52: #{tpu_custom_call.1} parent=1 // pred_region
      %s2127 = ssub.s32 64, 64
      %2128 = vsyncadd [#allocation10], %s2127
      %s2130 = sshll.u32 [#allocation9], 4
      %s2131 = int_to_ptr.vmem [resolvable:$true] %s2130
      %2133 = dma.vmem_to_hbm [thread:$0]  %s2131, 64, %s10, [#allocation10]
    $region53: #{tpu_custom_call.1} parent=1 // pred_fallthru
      _
    // Predicated region
    $region54: #{tpu_custom_call.1} parent=1 // pred_check
      _
    $region55: #{tpu_custom_call.1} parent=1 // pred_check_branch
      %2135 = sbr.rel (0) target = $region57
    $region56: #{tpu_custom_call.1} parent=1 // pred_region
      %2136 = dma.done [#allocation7], 1024
    $region57: #{tpu_custom_call.1} parent=1 // pred_fallthru
      _
    // Predicated region
    $region58: #{tpu_custom_call.1} parent=1 // pred_check
      _
    $region59: #{tpu_custom_call.1} parent=1 // pred_check_branch
      %2138 = sbr.rel (0) target = $region61
    $region60: #{tpu_custom_call.1} parent=1 // pred_region
      _
    $region61: #{tpu_custom_call.1} parent=1 // pred_fallthru
      _
    // Predicated region
    $region62: #{tpu_custom_call.1} parent=1 // pred_check
      _
    $region63: #{tpu_custom_call.1} parent=1 // pred_check_branch
      %2140 = sbr.rel (0) target = $region65
    $region64: #{tpu_custom_call.1} parent=1 // pred_region
      %2141 = dma.done [#allocation10], 64
    $region65: #{tpu_custom_call.1} parent=1 // pred_fallthru
      _
    %2142 = vsyncpa [#allocation6], 1
    %2143 = vsyncpa [#allocation7], 1
    %2144 = vsyncpa [#allocation10], 1

</llo_original>
